<compile_context>
chip_gen: v7x
topology: tpu7x:2x2x1
jax: 0.10.0
libtpu: 0.0.40
codegen_flags: <defaults>
</compile_context>

<pallas_src>
import functools

import jax
import jax.numpy as jnp
from jax import lax
from jax.experimental import pallas as pl
from jax.experimental.pallas import tpu as pltpu


# ---------------------------------------------------------------------------
# Fused kernel: one whole image per grid step (grid = (N,)).
# ---------------------------------------------------------------------------
def _fixup_bottleneck_kernel(scal_ref, w1_ref, w2_ref, w3_ref, mL_ref, mR_ref,
                             x_ref, o_ref, *, W, M, cdt):
    pe = W + 1                                   # lane pad so every shifted window is in-bounds

    # Fixup scalars (SMEM) -- read once up front.
    b1b = scal_ref[0]
    b2a = scal_ref[1]
    b2b = scal_ref[2]
    b3a = scal_ref[3]
    b3b = scal_ref[4]
    rscale = scal_ref[5]
    rbias = scal_ref[6]

    xin = x_ref[0]                               # (Cin, M) f32; also the residual identity

    # ---- conv1 (1x1) + bias1b, relu, + bias2a (conv2 input prologue) ----------
    z = jnp.dot(w1_ref[...], xin.astype(cdt),
                preferred_element_type=jnp.float32)          # (P, M) f32
    z = jnp.maximum(z + b1b, 0.0) + b2a
    z_c = z.astype(cdt)                                      # (P, M)
    P = z_c.shape[0]

    # ---- conv2 (3x3, padding=1 applied to z) ---------------------------------
    # 9 accumulating (P,P)@(P,M) matmuls on lane-shifted operands.
    # Row halo: zero lane-pad of width W+1 on both sides (taps reading above row 0
    # or below row H-1 land in the pad -> zero).  Column wraparound of the +-1 lane
    # shifts is killed by pre-zeroing image column 0 (used for dx=+1) / column W-1
    # (used for dx=-1) via masks precomputed in the wrapper.
    zeros = jnp.zeros((P, pe), cdt)
    ext = jnp.concatenate([zeros, z_c, zeros], axis=1)       # (P, M + 2*(W+1))
    extL = ext * mL_ref[...]                                 # image col 0 zeroed
    extR = ext * mR_ref[...]                                 # image col W-1 zeroed

    y2 = jnp.zeros((P, M), jnp.float32)
    for dy in (-1, 0, 1):
        for dx in (-1, 0, 1):
            k = (dy + 1) * 3 + (dx + 1)                      # == ky*3 + kx
            src = extL if dx == 1 else (extR if dx == -1 else ext)
            s = pe + dy * W + dx                             # static slice start
            y2 = y2 + jnp.dot(w2_ref[k], src[:, s:s + M],
                              preferred_element_type=jnp.float32)

    z3 = jnp.maximum(y2 + b2b, 0.0) + b3a                    # (P, M) f32

    # ---- conv3 (1x1) + bias3b --------------------------------------------------
    y3 = jnp.dot(w3_ref[...], z3.astype(cdt),
                 preferred_element_type=jnp.float32) + b3b   # (Cout, M) f32

    # ---- fused relu(out*rscale + rbias + identity)  (downsample=None path) -----
    o_ref[0] = jnp.maximum(y3 * rscale + rbias + xin, 0.0)


# ---------------------------------------------------------------------------
# Wrapper (accepts / returns NCHW, the PyTorch convention -- no transposes).
# ---------------------------------------------------------------------------
def fixup_bottleneck_forward(x_nchw, params, stride=1, *,
                             compute_dtype=jnp.bfloat16):
    """FixupBottleneck forward. x_nchw: (N, C, H, W) float32. Returns NCHW float32."""
    w1 = params["w1"]   # (inplanes, planes)          1x1 conv
    w2 = params["w2"]   # (3, 3, planes, planes)      3x3 conv, HWIO
    w3 = params["w3"]   # (planes, planes*expansion)  1x1 conv

    N, Cin, H, W = x_nchw.shape
    P = w1.shape[1]
    Cout = w3.shape[1]
    assert stride == 1 and Cin == Cout, "downsample=None path only"

    M = H * W
    pe = W + 1
    Mext = M + 2 * pe
    cdt = compute_dtype
    dsz = jnp.dtype(cdt).itemsize

    # Single f32 read of x (flat spatial): conv1 operand (cast in-kernel) AND identity.
    xf = x_nchw.astype(jnp.float32).reshape(N, Cin, M)

    # Weights in channels-first matmul layout, cast once for the MXU.
    w1t = jnp.asarray(w1, jnp.float32).T.astype(cdt)                            # (P, Cin)
    w2s = jnp.transpose(jnp.asarray(w2, jnp.float32),
                        (0, 1, 3, 2)).reshape(9, P, P).astype(cdt)              # (9, Pout, Pin)
    w3t = jnp.asarray(w3, jnp.float32).T.astype(cdt)                            # (Cout, P)

    # Column-edge masks over the lane-extended length (precomputed, resident).
    col = (jnp.arange(Mext, dtype=jnp.int32) - pe) % W
    mL = (col != 0).astype(cdt).reshape(1, Mext)        # zeroes image column 0
    mR = (col != W - 1).astype(cdt).reshape(1, Mext)    # zeroes image column W-1

    scal = jnp.array([params["bias1b"], params["bias2a"], params["bias2b"],
                      params["bias3a"], params["bias3b"],
                      params["rscale"], params["rbias"]], jnp.float32)

    # Rough per-step VMEM footprint sanity check (whole image resident).
    vmem_est = (2 * 4 * Cin * M                     # x blocks (double-buffered, f32)
                + 2 * 4 * Cout * M                  # out blocks
                + dsz * (P * Cin + 9 * P * P + Cout * P + 2 * Mext)   # weights + masks
                + 3 * dsz * P * Mext                # ext / extL / extR
                + 4 * (3 * P * M + Cout * M))       # z, y2, z3, y3 (f32)
    assert vmem_est < 28 * 1024 * 1024, ("per-image working set too large; "
                                         "add row tiling", vmem_est)

    flops = 2 * N * M * (Cin * P + 9 * P * P + P * Cout)
    bytes_accessed = (xf.size * 4 + N * Cout * M * 4
                      + (w1t.size + w2s.size + w3t.size + mL.size + mR.size) * dsz
                      + scal.size * 4)

    kern = functools.partial(_fixup_bottleneck_kernel, W=W, M=M, cdt=cdt)

    out = pl.pallas_call(
        kern,
        out_shape=jax.ShapeDtypeStruct((N, Cout, M), jnp.float32),
        grid=(N,),
        in_specs=[
            pl.BlockSpec(memory_space=pltpu.MemorySpace.SMEM),    # fixup scalars
            pl.BlockSpec((P, Cin), lambda n: (0, 0)),             # w1t   (resident)
            pl.BlockSpec((9, P, P), lambda n: (0, 0, 0)),         # w2s   (resident)
            pl.BlockSpec((Cout, P), lambda n: (0, 0)),            # w3t   (resident)
            pl.BlockSpec((1, Mext), lambda n: (0, 0)),            # mask L (resident)
            pl.BlockSpec((1, Mext), lambda n: (0, 0)),            # mask R (resident)
            pl.BlockSpec((1, Cin, M), lambda n: (n, 0, 0)),       # x (flat, f32)
        ],
        out_specs=pl.BlockSpec((1, Cout, M), lambda n: (n, 0, 0)),
        compiler_params=pltpu.CompilerParams(
            dimension_semantics=("parallel",),
            vmem_limit_bytes=32 * 1024 * 1024,
        ),
        cost_estimate=pl.CostEstimate(flops=flops, transcendentals=0,
                                      bytes_accessed=bytes_accessed),
    )(scal, w1t, w2s, w3t, mL, mR, xf)

    return out.reshape(N, Cout, H, W)


# ---------------------------------------------------------------------------
# Pure-JAX reference (same assumed semantics) for correctness check.
# compute_dtype controls matmul-operand precision (f32 accumulation always).
# ---------------------------------------------------------------------------
def reference_forward(x_nchw, params, stride=1, compute_dtype=jnp.float32):
    cdt = compute_dtype
    x = jnp.transpose(x_nchw, (0, 2, 3, 1)).astype(jnp.float32)   # NHWC
    y1 = jnp.einsum("nhwc,cp->nhwp", x.astype(cdt), params["w1"].astype(cdt),
                    preferred_element_type=jnp.float32) + params["bias1b"]
    z = jax.nn.relu(y1) + params["bias2a"]
    y2 = lax.conv_general_dilated(
        z.astype(cdt), params["w2"].astype(cdt), (stride, stride), ((1, 1), (1, 1)),
        dimension_numbers=("NHWC", "HWIO", "NHWC"),
        preferred_element_type=jnp.float32) + params["bias2b"]
    z3 = jax.nn.relu(y2) + params["bias3a"]
    y3 = jnp.einsum("nhwp,pq->nhwq", z3.astype(cdt), params["w3"].astype(cdt),
                    preferred_element_type=jnp.float32) + params["bias3b"]
    out = jax.nn.relu(y3 * params["rscale"] + params["rbias"] + x)
    return jnp.transpose(out, (0, 3, 1, 2))


if __name__ == "__main__":
    expansion = 4
    planes = 4
    inplanes = planes * expansion   # 16 -> identity path valid (downsample=None)
    stride = 1
    N, H, W = 2, 16, 16

    key = jax.random.PRNGKey(0)
    k1, k2, k3, kx = jax.random.split(key, 4)

    params = {
        "w1": jax.random.normal(k1, (inplanes, planes), jnp.float32)
              / jnp.sqrt(float(inplanes)),
        "w2": jax.random.normal(k2, (3, 3, planes, planes), jnp.float32)
              / jnp.sqrt(9.0 * planes),
        "w3": jax.random.normal(k3, (planes, planes * expansion), jnp.float32)
              / jnp.sqrt(float(planes)),
        # fixup scalar params (nn.Parameter shapes are (1,); scalars here)
        "bias1b": 0.01, "bias2a": -0.02, "bias2b": 0.03,
        "bias3a": -0.01, "bias3b": 0.02,
        "rscale": 1.1, "rbias": 0.05,
    }

    x = jax.random.normal(kx, (N, inplanes, H, W), jnp.float32)   # NCHW input

    # 1) f32 compute path: exercises the shifted-operand conv2 and edge masking
    #    exactly; tight tolerance against the f32 reference.
    out_f32 = jax.block_until_ready(
        fixup_bottleneck_forward(x, params, stride=stride,
                                 compute_dtype=jnp.float32))
    ref_f32 = jax.block_until_ready(reference_forward(x, params, stride=stride))
    assert out_f32.shape == (N, planes * expansion, H, W), out_f32.shape
    assert jnp.allclose(out_f32, ref_f32, atol=1e-4, rtol=1e-4), \
        float(jnp.max(jnp.abs(out_f32 - ref_f32)))

    # 2) bf16 MXU-operand path (production default); compare against a reference
    #    using the same bf16-operand / f32-accumulate policy.
    out_bf16 = jax.block_until_ready(
        fixup_bottleneck_forward(x, params, stride=stride))
    ref_bf16 = jax.block_until_ready(
        reference_forward(x, params, stride=stride, compute_dtype=jnp.bfloat16))
    assert jnp.allclose(out_bf16, ref_bf16, atol=2e-2, rtol=2e-2), \
        float(jnp.max(jnp.abs(out_bf16 - ref_bf16)))

    print("KERNEL_OK")
</pallas_src>

<mosaic_0001>
module attributes {stable_mosaic.version = 11 : i64} {
  func.func @_fixup_bottleneck_kernel(%arg0: i32, %arg1: memref<7xf32, #tpu.memory_space<smem>>, %arg2: memref<4x16xf32, #tpu.memory_space<vmem>>, %arg3: memref<9x4x4xf32, #tpu.memory_space<vmem>>, %arg4: memref<16x4xf32, #tpu.memory_space<vmem>>, %arg5: memref<1x290xf32, #tpu.memory_space<vmem>>, %arg6: memref<1x290xf32, #tpu.memory_space<vmem>>, %arg7: memref<1x16x256xf32, #tpu.memory_space<vmem>>, %arg8: memref<1x16x256xf32, #tpu.memory_space<vmem>>) attributes {dimension_semantics = [#tpu.dimension_semantics<parallel>], iteration_bounds = array<i64: 2>, scalar_prefetch = 0 : i64, scratch_operands = 0 : i64, tpu.core_type = #tpu.core_type<tc>, window_params = [{transform_indices = @transform_0, window_bounds = array<i64: 7>}, {pipeline_mode = #tpu.pipeline_mode<synchronous>, transform_indices = @transform_1, window_bounds = array<i64: 4, 16>}, {pipeline_mode = #tpu.pipeline_mode<synchronous>, transform_indices = @transform_2, window_bounds = array<i64: 9, 4, 4>}, {pipeline_mode = #tpu.pipeline_mode<synchronous>, transform_indices = @transform_3, window_bounds = array<i64: 16, 4>}, {pipeline_mode = #tpu.pipeline_mode<synchronous>, transform_indices = @transform_4, window_bounds = array<i64: 1, 290>}, {pipeline_mode = #tpu.pipeline_mode<synchronous>, transform_indices = @transform_5, window_bounds = array<i64: 1, 290>}, {transform_indices = @transform_6, window_bounds = array<i64: 1, 16, 256>}, {transform_indices = @transform_7, window_bounds = array<i64: 1, 16, 256>}]} {
    %c0 = arith.constant 0 : index
    %0 = memref.load %arg1[%c0] : memref<7xf32, #tpu.memory_space<smem>>
    %c1 = arith.constant 1 : index
    %1 = memref.load %arg1[%c1] : memref<7xf32, #tpu.memory_space<smem>>
    %c2 = arith.constant 2 : index
    %2 = memref.load %arg1[%c2] : memref<7xf32, #tpu.memory_space<smem>>
    %c3 = arith.constant 3 : index
    %3 = memref.load %arg1[%c3] : memref<7xf32, #tpu.memory_space<smem>>
    %c4 = arith.constant 4 : index
    %4 = memref.load %arg1[%c4] : memref<7xf32, #tpu.memory_space<smem>>
    %c5 = arith.constant 5 : index
    %5 = memref.load %arg1[%c5] : memref<7xf32, #tpu.memory_space<smem>>
    %c6 = arith.constant 6 : index
    %6 = memref.load %arg1[%c6] : memref<7xf32, #tpu.memory_space<smem>>
    %c0_0 = arith.constant 0 : index
    %c0_1 = arith.constant 0 : index
    %c0_2 = arith.constant 0 : index
    %7 = vector.load %arg7[%c0_0, %c0_1, %c0_2] : memref<1x16x256xf32, #tpu.memory_space<vmem>>, vector<1x16x256xf32>
    %8 = vector.shape_cast %7 : vector<1x16x256xf32> to vector<16x256xf32>
    %c0_3 = arith.constant 0 : index
    %c0_4 = arith.constant 0 : index
    %9 = vector.load %arg2[%c0_3, %c0_4] : memref<4x16xf32, #tpu.memory_space<vmem>>, vector<4x16xf32>
    %cst = arith.constant dense<0.000000e+00> : vector<4x256xf32>
    %10 = tpu.matmul %9, %8, %cst {dimension_numbers = #tpu.dot_dimension_numbers<[1], [0], [0], [1], [0, 0, 1, 1], [], []>} : vector<4x16xf32>, vector<16x256xf32>, vector<4x256xf32> -> vector<4x256xf32>
    %11 = vector.broadcast %0 : f32 to vector<4x256xf32>
    %12 = arith.addf %10, %11 : vector<4x256xf32>
    %cst_5 = arith.constant 0.000000e+00 : f32
    %13 = vector.broadcast %cst_5 : f32 to vector<4x256xf32>
    %14 = arith.maximumf %12, %13 : vector<4x256xf32>
    %15 = vector.broadcast %1 : f32 to vector<4x256xf32>
    %16 = arith.addf %14, %15 : vector<4x256xf32>
    %cst_6 = arith.constant 0.000000e+00 : f32
    %17 = vector.broadcast %cst_6 : f32 to vector<4x17xf32>
    %18 = tpu.concatenate %17, %16, %17 in 1 : vector<4x17xf32>, vector<4x256xf32>, vector<4x17xf32> -> vector<4x290xf32>
    %c0_7 = arith.constant 0 : index
    %c0_8 = arith.constant 0 : index
    %19 = vector.load %arg5[%c0_7, %c0_8] : memref<1x290xf32, #tpu.memory_space<vmem>>, vector<1x290xf32>
    %20 = vector.broadcast %19 : vector<1x290xf32> to vector<4x290xf32>
    %21 = arith.mulf %18, %20 : vector<4x290xf32>
    %c0_9 = arith.constant 0 : index
    %c0_10 = arith.constant 0 : index
    %22 = vector.load %arg6[%c0_9, %c0_10] : memref<1x290xf32, #tpu.memory_space<vmem>>, vector<1x290xf32>
    %23 = vector.broadcast %22 : vector<1x290xf32> to vector<4x290xf32>
    %24 = arith.mulf %18, %23 : vector<4x290xf32>
    %cst_11 = arith.constant 0.000000e+00 : f32
    %25 = vector.broadcast %cst_11 : f32 to vector<4x256xf32>
    %c0_12 = arith.constant 0 : index
    %c0_13 = arith.constant 0 : index
    %c0_14 = arith.constant 0 : index
    %26 = vector.load %arg3[%c0_12, %c0_13, %c0_14] : memref<9x4x4xf32, #tpu.memory_space<vmem>>, vector<1x4x4xf32>
    %27 = vector.shape_cast %26 : vector<1x4x4xf32> to vector<4x4xf32>
    %28 = vector.extract_strided_slice %24 {offsets = [0, 0], sizes = [4, 256], strides = [1, 1]} : vector<4x290xf32> to vector<4x256xf32>
    %cst_15 = arith.constant dense<0.000000e+00> : vector<4x256xf32>
    %29 = tpu.matmul %27, %28, %cst_15 {dimension_numbers = #tpu.dot_dimension_numbers<[1], [0], [0], [1], [0, 0, 1, 1], [], []>} : vector<4x4xf32>, vector<4x256xf32>, vector<4x256xf32> -> vector<4x256xf32>
    %30 = arith.addf %25, %29 : vector<4x256xf32>
    %c1_16 = arith.constant 1 : index
    %c0_17 = arith.constant 0 : index
    %c0_18 = arith.constant 0 : index
    %31 = vector.load %arg3[%c1_16, %c0_17, %c0_18] : memref<9x4x4xf32, #tpu.memory_space<vmem>>, vector<1x4x4xf32>
    %32 = vector.shape_cast %31 : vector<1x4x4xf32> to vector<4x4xf32>
    %33 = vector.extract_strided_slice %18 {offsets = [0, 1], sizes = [4, 256], strides = [1, 1]} : vector<4x290xf32> to vector<4x256xf32>
    %cst_19 = arith.constant dense<0.000000e+00> : vector<4x256xf32>
    %34 = tpu.matmul %32, %33, %cst_19 {dimension_numbers = #tpu.dot_dimension_numbers<[1], [0], [0], [1], [0, 0, 1, 1], [], []>} : vector<4x4xf32>, vector<4x256xf32>, vector<4x256xf32> -> vector<4x256xf32>
    %35 = arith.addf %30, %34 : vector<4x256xf32>
    %c2_20 = arith.constant 2 : index
    %c0_21 = arith.constant 0 : index
    %c0_22 = arith.constant 0 : index
    %36 = vector.load %arg3[%c2_20, %c0_21, %c0_22] : memref<9x4x4xf32, #tpu.memory_space<vmem>>, vector<1x4x4xf32>
    %37 = vector.shape_cast %36 : vector<1x4x4xf32> to vector<4x4xf32>
    %38 = vector.extract_strided_slice %21 {offsets = [0, 2], sizes = [4, 256], strides = [1, 1]} : vector<4x290xf32> to vector<4x256xf32>
    %cst_23 = arith.constant dense<0.000000e+00> : vector<4x256xf32>
    %39 = tpu.matmul %37, %38, %cst_23 {dimension_numbers = #tpu.dot_dimension_numbers<[1], [0], [0], [1], [0, 0, 1, 1], [], []>} : vector<4x4xf32>, vector<4x256xf32>, vector<4x256xf32> -> vector<4x256xf32>
    %40 = arith.addf %35, %39 : vector<4x256xf32>
    %c3_24 = arith.constant 3 : index
    %c0_25 = arith.constant 0 : index
    %c0_26 = arith.constant 0 : index
    %41 = vector.load %arg3[%c3_24, %c0_25, %c0_26] : memref<9x4x4xf32, #tpu.memory_space<vmem>>, vector<1x4x4xf32>
    %42 = vector.shape_cast %41 : vector<1x4x4xf32> to vector<4x4xf32>
    %43 = vector.extract_strided_slice %24 {offsets = [0, 16], sizes = [4, 256], strides = [1, 1]} : vector<4x290xf32> to vector<4x256xf32>
    %cst_27 = arith.constant dense<0.000000e+00> : vector<4x256xf32>
    %44 = tpu.matmul %42, %43, %cst_27 {dimension_numbers = #tpu.dot_dimension_numbers<[1], [0], [0], [1], [0, 0, 1, 1], [], []>} : vector<4x4xf32>, vector<4x256xf32>, vector<4x256xf32> -> vector<4x256xf32>
    %45 = arith.addf %40, %44 : vector<4x256xf32>
    %c4_28 = arith.constant 4 : index
    %c0_29 = arith.constant 0 : index
    %c0_30 = arith.constant 0 : index
    %46 = vector.load %arg3[%c4_28, %c0_29, %c0_30] : memref<9x4x4xf32, #tpu.memory_space<vmem>>, vector<1x4x4xf32>
    %47 = vector.shape_cast %46 : vector<1x4x4xf32> to vector<4x4xf32>
    %48 = vector.extract_strided_slice %18 {offsets = [0, 17], sizes = [4, 256], strides = [1, 1]} : vector<4x290xf32> to vector<4x256xf32>
    %cst_31 = arith.constant dense<0.000000e+00> : vector<4x256xf32>
    %49 = tpu.matmul %47, %48, %cst_31 {dimension_numbers = #tpu.dot_dimension_numbers<[1], [0], [0], [1], [0, 0, 1, 1], [], []>} : vector<4x4xf32>, vector<4x256xf32>, vector<4x256xf32> -> vector<4x256xf32>
    %50 = arith.addf %45, %49 : vector<4x256xf32>
    %c5_32 = arith.constant 5 : index
    %c0_33 = arith.constant 0 : index
    %c0_34 = arith.constant 0 : index
    %51 = vector.load %arg3[%c5_32, %c0_33, %c0_34] : memref<9x4x4xf32, #tpu.memory_space<vmem>>, vector<1x4x4xf32>
    %52 = vector.shape_cast %51 : vector<1x4x4xf32> to vector<4x4xf32>
    %53 = vector.extract_strided_slice %21 {offsets = [0, 18], sizes = [4, 256], strides = [1, 1]} : vector<4x290xf32> to vector<4x256xf32>
    %cst_35 = arith.constant dense<0.000000e+00> : vector<4x256xf32>
    %54 = tpu.matmul %52, %53, %cst_35 {dimension_numbers = #tpu.dot_dimension_numbers<[1], [0], [0], [1], [0, 0, 1, 1], [], []>} : vector<4x4xf32>, vector<4x256xf32>, vector<4x256xf32> -> vector<4x256xf32>
    %55 = arith.addf %50, %54 : vector<4x256xf32>
    %c6_36 = arith.constant 6 : index
    %c0_37 = arith.constant 0 : index
    %c0_38 = arith.constant 0 : index
    %56 = vector.load %arg3[%c6_36, %c0_37, %c0_38] : memref<9x4x4xf32, #tpu.memory_space<vmem>>, vector<1x4x4xf32>
    %57 = vector.shape_cast %56 : vector<1x4x4xf32> to vector<4x4xf32>
    %58 = vector.extract_strided_slice %24 {offsets = [0, 32], sizes = [4, 256], strides = [1, 1]} : vector<4x290xf32> to vector<4x256xf32>
    %cst_39 = arith.constant dense<0.000000e+00> : vector<4x256xf32>
    %59 = tpu.matmul %57, %58, %cst_39 {dimension_numbers = #tpu.dot_dimension_numbers<[1], [0], [0], [1], [0, 0, 1, 1], [], []>} : vector<4x4xf32>, vector<4x256xf32>, vector<4x256xf32> -> vector<4x256xf32>
    %60 = arith.addf %55, %59 : vector<4x256xf32>
    %c7 = arith.constant 7 : index
    %c0_40 = arith.constant 0 : index
    %c0_41 = arith.constant 0 : index
    %61 = vector.load %arg3[%c7, %c0_40, %c0_41] : memref<9x4x4xf32, #tpu.memory_space<vmem>>, vector<1x4x4xf32>
    %62 = vector.shape_cast %61 : vector<1x4x4xf32> to vector<4x4xf32>
    %63 = vector.extract_strided_slice %18 {offsets = [0, 33], sizes = [4, 256], strides = [1, 1]} : vector<4x290xf32> to vector<4x256xf32>
    %cst_42 = arith.constant dense<0.000000e+00> : vector<4x256xf32>
    %64 = tpu.matmul %62, %63, %cst_42 {dimension_numbers = #tpu.dot_dimension_numbers<[1], [0], [0], [1], [0, 0, 1, 1], [], []>} : vector<4x4xf32>, vector<4x256xf32>, vector<4x256xf32> -> vector<4x256xf32>
    %65 = arith.addf %60, %64 : vector<4x256xf32>
    %c8 = arith.constant 8 : index
    %c0_43 = arith.constant 0 : index
    %c0_44 = arith.constant 0 : index
    %66 = vector.load %arg3[%c8, %c0_43, %c0_44] : memref<9x4x4xf32, #tpu.memory_space<vmem>>, vector<1x4x4xf32>
    %67 = vector.shape_cast %66 : vector<1x4x4xf32> to vector<4x4xf32>
    %68 = vector.extract_strided_slice %21 {offsets = [0, 34], sizes = [4, 256], strides = [1, 1]} : vector<4x290xf32> to vector<4x256xf32>
    %cst_45 = arith.constant dense<0.000000e+00> : vector<4x256xf32>
    %69 = tpu.matmul %67, %68, %cst_45 {dimension_numbers = #tpu.dot_dimension_numbers<[1], [0], [0], [1], [0, 0, 1, 1], [], []>} : vector<4x4xf32>, vector<4x256xf32>, vector<4x256xf32> -> vector<4x256xf32>
    %70 = arith.addf %65, %69 : vector<4x256xf32>
    %71 = vector.broadcast %2 : f32 to vector<4x256xf32>
    %72 = arith.addf %70, %71 : vector<4x256xf32>
    %cst_46 = arith.constant 0.000000e+00 : f32
    %73 = vector.broadcast %cst_46 : f32 to vector<4x256xf32>
    %74 = arith.maximumf %72, %73 : vector<4x256xf32>
    %75 = vector.broadcast %3 : f32 to vector<4x256xf32>
    %76 = arith.addf %74, %75 : vector<4x256xf32>
    %c0_47 = arith.constant 0 : index
    %c0_48 = arith.constant 0 : index
    %77 = vector.load %arg4[%c0_47, %c0_48] : memref<16x4xf32, #tpu.memory_space<vmem>>, vector<16x4xf32>
    %cst_49 = arith.constant dense<0.000000e+00> : vector<16x256xf32>
    %78 = tpu.matmul %77, %76, %cst_49 {dimension_numbers = #tpu.dot_dimension_numbers<[1], [0], [0], [1], [0, 0, 1, 1], [], []>} : vector<16x4xf32>, vector<4x256xf32>, vector<16x256xf32> -> vector<16x256xf32>
    %79 = vector.broadcast %4 : f32 to vector<16x256xf32>
    %80 = arith.addf %78, %79 : vector<16x256xf32>
    %81 = vector.broadcast %5 : f32 to vector<16x256xf32>
    %82 = arith.mulf %80, %81 : vector<16x256xf32>
    %83 = vector.broadcast %6 : f32 to vector<16x256xf32>
    %84 = arith.addf %82, %83 : vector<16x256xf32>
    %85 = arith.addf %84, %8 : vector<16x256xf32>
    %cst_50 = arith.constant 0.000000e+00 : f32
    %86 = vector.broadcast %cst_50 : f32 to vector<16x256xf32>
    %87 = arith.maximumf %85, %86 : vector<16x256xf32>
    %c0_51 = arith.constant 0 : index
    %c0_52 = arith.constant 0 : index
    %c0_53 = arith.constant 0 : index
    %88 = vector.load %arg8[%c0_51, %c0_52, %c0_53] : memref<1x16x256xf32, #tpu.memory_space<vmem>>, vector<1x16x256xf32>
    %89 = vector.shape_cast %88 : vector<1x16x256xf32> to vector<16x256xf32>
    %90 = vector.shape_cast %87 : vector<16x256xf32> to vector<1x16x256xf32>
    tpu.vector_store %arg8[%c0_51, %c0_52, %c0_53], %90 {strides = array<i32>} : memref<1x16x256xf32, #tpu.memory_space<vmem>>, vector<1x16x256xf32>,
    return
  }
  func.func @transform_0(%arg0: i32) -> i32 {
    %c0_i32 = arith.constant 0 : i32
    %c0_i32_0 = arith.constant 0 : i32
    return %c0_i32 : i32
  }
  func.func @transform_1(%arg0: i32) -> (i32, i32) {
    %c0_i32 = arith.constant 0 : i32
    %c0_i32_0 = arith.constant 0 : i32
    %c0_i32_1 = arith.constant 0 : i32
    return %c0_i32, %c0_i32_0 : i32, i32
  }
  func.func @transform_2(%arg0: i32) -> (i32, i32, i32) {
    %c0_i32 = arith.constant 0 : i32
    %c0_i32_0 = arith.constant 0 : i32
    %c0_i32_1 = arith.constant 0 : i32
    %c0_i32_2 = arith.constant 0 : i32
    return %c0_i32, %c0_i32_0, %c0_i32_1 : i32, i32, i32
  }
  func.func @transform_3(%arg0: i32) -> (i32, i32) {
    %c0_i32 = arith.constant 0 : i32
    %c0_i32_0 = arith.constant 0 : i32
    %c0_i32_1 = arith.constant 0 : i32
    return %c0_i32, %c0_i32_0 : i32, i32
  }
  func.func @transform_4(%arg0: i32) -> (i32, i32) {
    %c0_i32 = arith.constant 0 : i32
    %c0_i32_0 = arith.constant 0 : i32
    %c0_i32_1 = arith.constant 0 : i32
    return %c0_i32, %c0_i32_0 : i32, i32
  }
  func.func @transform_5(%arg0: i32) -> (i32, i32) {
    %c0_i32 = arith.constant 0 : i32
    %c0_i32_0 = arith.constant 0 : i32
    %c0_i32_1 = arith.constant 0 : i32
    return %c0_i32, %c0_i32_0 : i32, i32
  }
  func.func @transform_6(%arg0: i32) -> (i32, i32, i32) {
    %c0_i32 = arith.constant 0 : i32
    %c0_i32_0 = arith.constant 0 : i32
    %c0_i32_1 = arith.constant 0 : i32
    return %arg0, %c0_i32, %c0_i32_0 : i32, i32, i32
  }
  func.func @transform_7(%arg0: i32) -> (i32, i32, i32) {
    %c0_i32 = arith.constant 0 : i32
    %c0_i32_0 = arith.constant 0 : i32
    %c0_i32_1 = arith.constant 0 : i32
    return %arg0, %c0_i32, %c0_i32_0 : i32, i32, i32
  }
}

</mosaic_0001>

<llo_original>
// kernel: tpu_custom_call.1
$region0: #{tpu_custom_call.1}
  #allocation0 [shape = 'u32[]', space=smem, size = 0x4, offset = 0x4, fixed_abs, tag = 'smem constant byte address 0x4 - core index']
  #allocation1 [shape = 'u32[144,128]{1,0:T(1,128)}', space=vmem, size = 0x12000, scoped, tag = 'internal scratch']
  %s0 = inlined_call_operand.vmem [shape: f32[7], index: 0, kind: input, shape index: {}]
  %s1 = inlined_call_operand.vmem [shape: f32[4,16], index: 1, kind: input, shape index: {}]
  %s2 = inlined_call_operand.vmem [shape: f32[9,4,4], index: 2, kind: input, shape index: {}]
  %s3 = inlined_call_operand.vmem [shape: f32[16,4], index: 3, kind: input, shape index: {}]
  %s4 = inlined_call_operand.vmem [shape: f32[1,290], index: 4, kind: input, shape index: {}]
  %s5 = inlined_call_operand.vmem [shape: f32[1,290], index: 5, kind: input, shape index: {}]
  %s6 = inlined_call_operand.vmem [shape: f32[2,16,256], index: 6, kind: input, shape index: {}]
  %s7 = inlined_call_operand.hbm [shape: f32[2,16,256], index: 7, kind: output, shape index: {}]
  %s8 = sld [smem:[#allocation0]]
  $region65: #{tpu_custom_call.1} parent=0
    _
  %s10 = ssub.s32 1, %s8
  %s11 = scalar_select 0, %s10, %s8
  $region1: #{tpu_custom_call.1} parent=0
    #allocation2 [shape = 'u8[512]{0}', space=smem, size = 0x200, scoped, tag = 'input window, operand 0, single buffered']
    #allocation3 [shape = 's32[2]{0}', space=sflag, size = 0x8, scoped, tag = 'scoped memory for tpu_custom_call.1']
    #allocation4 [shape = 's32[2]{0}', space=sflag, size = 0x8, scoped, tag = 'scoped memory for tpu_custom_call.1']
    #allocation5 [shape = 'u8[32768]{0}', space=vmem, size = 0x8000, scoped, tag = 'output window, operand 0']
    %12 = vsyncpa [#allocation4], 0
    %13 = vsyncpa [#allocation3], 0
    %s14 = scalar_lea.sflag [#allocation3], 1
    %15 = vsyncpa %s14, 0
    loop: start=0, step=1, limit=4
    $region2: #{tpu_custom_call.1} parent=1 // loop_pre_header
      _
    $region3: #{tpu_custom_call.1} parent=1 // loop_header
      %s17 = sphi 0, %s21
      %p18 = scmp.ge.s32.totalorder %s17, 4
      %s25 = sphi 0, %s25
      %s27 = sphi 0, %s25
      %s28 = sphi 0, %s27
      %s42 = sphi 0, %s28
      %s46 = sphi 0, %s46
      %s48 = sphi 0, %s46
      %s49 = sphi 0, %s48
      %s63 = sphi 0, %s49
      %s67 = sphi 0, %s67
      %s69 = sphi 0, %s67
      %s70 = sphi 0, %s69
      %s84 = sphi 0, %s70
      %s88 = sphi 0, %s88
      %s90 = sphi 0, %s88
      %s91 = sphi 0, %s90
      %s105 = sphi 0, %s91
      %s109 = sphi 0, %s109
      %s111 = sphi 0, %s109
      %s112 = sphi 0, %s111
      %s126 = sphi 0, %s112
      %s130 = sphi 0, %s130
      %s132 = sphi 0, %s130
      %s133 = sphi 0, %s132
      %s147 = sphi 0, %s133
      %s153 = sphi 0, %s155
      %s156 = sphi 0, %s153
      %s157 = sphi 0, %s156
      %s173 = sphi 0, %s157
      %s179 = sphi 0, %s181
      %s182 = sphi 0, %s179
      %s183 = sphi 0, %s182
      %s199 = sphi 0, %s183
    $region4: #{tpu_custom_call.1} parent=1 // loop_header_branch
      %20 = sbr.rel (%p18) target = $region8
    $region5: #{tpu_custom_call.1} parent=1 // loop_body
      %s22 = ssub.s32 %s17, 1
      %s23 = ssub.s32 %s17, 2
      %s24 = sadd.s32 %s17, 1
      %s26 = sadd.s32 %s25, 1
      %p29 = scmp.eq.s32.totalorder %s17, 1
      %p30 = scmp.ne.s32.totalorder %s25, %s27
      %p31 = scmp.eq.s32.totalorder %s17, 0
      %p32 = por %p30, %p31
      %p33 = scmp.ne.s32.totalorder %s25, %s27
      %p34 = scmp.eq.s32.totalorder %s22, 1
      %p35 = por %p33, %p34
      %p36 = scmp.ne.s32.totalorder %s27, %s28
      %p37 = scmp.eq.s32.totalorder %s22, 0
      %p38 = por %p36, %p37
      %p39 = scmp.ne.s32.totalorder %s27, %s28
      %p40 = scmp.eq.s32.totalorder %s23, 1
      %p41 = por %p39, %p40
      %p43 = scmp.ne.s32.totalorder %s28, %s42
      %p44 = scmp.eq.s32.totalorder %s23, 0
      %p45 = por %p43, %p44
      %s47 = sadd.s32 %s46, 1
      %p50 = scmp.eq.s32.totalorder %s17, 1
      %p51 = scmp.ne.s32.totalorder %s46, %s48
      %p52 = scmp.eq.s32.totalorder %s17, 0
      %p53 = por %p51, %p52
      %p54 = scmp.ne.s32.totalorder %s46, %s48
      %p55 = scmp.eq.s32.totalorder %s22, 1
      %p56 = por %p54, %p55
      %p57 = scmp.ne.s32.totalorder %s48, %s49
      %p58 = scmp.eq.s32.totalorder %s22, 0
      %p59 = por %p57, %p58
      %p60 = scmp.ne.s32.totalorder %s48, %s49
      %p61 = scmp.eq.s32.totalorder %s23, 1
      %p62 = por %p60, %p61
      %p64 = scmp.ne.s32.totalorder %s49, %s63
      %p65 = scmp.eq.s32.totalorder %s23, 0
      %p66 = por %p64, %p65
      %s68 = sadd.s32 %s67, 1
      %p71 = scmp.eq.s32.totalorder %s17, 1
      %p72 = scmp.ne.s32.totalorder %s67, %s69
      %p73 = scmp.eq.s32.totalorder %s17, 0
      %p74 = por %p72, %p73
      %p75 = scmp.ne.s32.totalorder %s67, %s69
      %p76 = scmp.eq.s32.totalorder %s22, 1
      %p77 = por %p75, %p76
      %p78 = scmp.ne.s32.totalorder %s69, %s70
      %p79 = scmp.eq.s32.totalorder %s22, 0
      %p80 = por %p78, %p79
      %p81 = scmp.ne.s32.totalorder %s69, %s70
      %p82 = scmp.eq.s32.totalorder %s23, 1
      %p83 = por %p81, %p82
      %p85 = scmp.ne.s32.totalorder %s70, %s84
      %p86 = scmp.eq.s32.totalorder %s23, 0
      %p87 = por %p85, %p86
      %s89 = sadd.s32 %s88, 1
      %p92 = scmp.eq.s32.totalorder %s17, 1
      %p93 = scmp.ne.s32.totalorder %s88, %s90
      %p94 = scmp.eq.s32.totalorder %s17, 0
      %p95 = por %p93, %p94
      %p96 = scmp.ne.s32.totalorder %s88, %s90
      %p97 = scmp.eq.s32.totalorder %s22, 1
      %p98 = por %p96, %p97
      %p99 = scmp.ne.s32.totalorder %s90, %s91
      %p100 = scmp.eq.s32.totalorder %s22, 0
      %p101 = por %p99, %p100
      %p102 = scmp.ne.s32.totalorder %s90, %s91
      %p103 = scmp.eq.s32.totalorder %s23, 1
      %p104 = por %p102, %p103
      %p106 = scmp.ne.s32.totalorder %s91, %s105
      %p107 = scmp.eq.s32.totalorder %s23, 0
      %p108 = por %p106, %p107
      %s110 = sadd.s32 %s109, 1
      %p113 = scmp.eq.s32.totalorder %s17, 1
      %p114 = scmp.ne.s32.totalorder %s109, %s111
      %p115 = scmp.eq.s32.totalorder %s17, 0
      %p116 = por %p114, %p115
      %p117 = scmp.ne.s32.totalorder %s109, %s111
      %p118 = scmp.eq.s32.totalorder %s22, 1
      %p119 = por %p117, %p118
      %p120 = scmp.ne.s32.totalorder %s111, %s112
      %p121 = scmp.eq.s32.totalorder %s22, 0
      %p122 = por %p120, %p121
      %p123 = scmp.ne.s32.totalorder %s111, %s112
      %p124 = scmp.eq.s32.totalorder %s23, 1
      %p125 = por %p123, %p124
      %p127 = scmp.ne.s32.totalorder %s112, %s126
      %p128 = scmp.eq.s32.totalorder %s23, 0
      %p129 = por %p127, %p128
      %s131 = sadd.s32 %s130, 1
      %p134 = scmp.eq.s32.totalorder %s17, 1
      %p135 = scmp.ne.s32.totalorder %s130, %s132
      %p136 = scmp.eq.s32.totalorder %s17, 0
      %p137 = por %p135, %p136
      %p138 = scmp.ne.s32.totalorder %s130, %s132
      %p139 = scmp.eq.s32.totalorder %s22, 1
      %p140 = por %p138, %p139
      %p141 = scmp.ne.s32.totalorder %s132, %s133
      %p142 = scmp.eq.s32.totalorder %s22, 0
      %p143 = por %p141, %p142
      %p144 = scmp.ne.s32.totalorder %s132, %s133
      %p145 = scmp.eq.s32.totalorder %s23, 1
      %p146 = por %p144, %p145
      %p148 = scmp.ne.s32.totalorder %s133, %s147
      %p149 = scmp.eq.s32.totalorder %s23, 0
      %p150 = por %p148, %p149
      %s151 = ssub.s32 %s17, %s24
      %p152 = scmp.eq.s32.totalorder %s151, 0
      %s154 = sadd.s32 %s153, 1
      %s155 = scalar_select %p152, %s153, %s154
      %p158 = pneg %p152
      %p159 = scmp.eq.s32.totalorder %s17, 1
      %p160 = por %p158, %p159
      %p161 = scmp.ne.s32.totalorder %s153, %s156
      %p162 = scmp.eq.s32.totalorder %s17, 0
      %p163 = por %p161, %p162
      %p164 = scmp.ne.s32.totalorder %s153, %s156
      %p165 = scmp.eq.s32.totalorder %s22, 1
      %p166 = por %p164, %p165
      %p167 = scmp.ne.s32.totalorder %s156, %s157
      %p168 = scmp.eq.s32.totalorder %s22, 0
      %p169 = por %p167, %p168
      %p170 = scmp.ne.s32.totalorder %s156, %s157
      %p171 = scmp.eq.s32.totalorder %s23, 1
      %p172 = por %p170, %p171
      %p174 = scmp.ne.s32.totalorder %s157, %s173
      %p175 = scmp.eq.s32.totalorder %s23, 0
      %p176 = por %p174, %p175
      %s177 = ssub.s32 %s17, %s24
      %p178 = scmp.eq.s32.totalorder %s177, 0
      %s180 = sadd.s32 %s179, 1
      %s181 = scalar_select %p178, %s179, %s180
      %p184 = pneg %p178
      %p185 = scmp.eq.s32.totalorder %s17, 1
      %p186 = por %p184, %p185
      %p187 = scmp.ne.s32.totalorder %s179, %s182
      %p188 = scmp.eq.s32.totalorder %s17, 0
      %p189 = por %p187, %p188
      %p190 = scmp.ne.s32.totalorder %s179, %s182
      %p191 = scmp.eq.s32.totalorder %s22, 1
      %p192 = por %p190, %p191
      %p193 = scmp.ne.s32.totalorder %s182, %s183
      %p194 = scmp.eq.s32.totalorder %s22, 0
      %p195 = por %p193, %p194
      %p196 = scmp.ne.s32.totalorder %s182, %s183
      %p197 = scmp.eq.s32.totalorder %s23, 1
      %p198 = por %p196, %p197
      %p200 = scmp.ne.s32.totalorder %s183, %s199
      %p201 = scmp.eq.s32.totalorder %s23, 0
      %p202 = por %p200, %p201
      %p203 = scmp.le.s32.totalorder 1, %s17
      %p204 = scmp.lt.s32.totalorder %s17, 3
      %p205 = pnand %p203, %p204
      %p206 = pneg %p205
      // Predicated region
      $region9: #{tpu_custom_call.1} parent=5 // pred_check
        _
      $region10: #{tpu_custom_call.1} parent=5 // pred_check_branch
        %208 = sbr.rel (%p205) target = $region12
      $region11: #{tpu_custom_call.1} parent=5 // pred_region
        %s209 = ssub.s32 %s17, 1
        // Predicated region
        $region13: #{tpu_custom_call.1} parent=11 // pred_check
          %p210 = pneg %p38
        $region14: #{tpu_custom_call.1} parent=11 // pred_check_branch
          %212 = sbr.rel (%p210) target = $region16
        $region15: #{tpu_custom_call.1} parent=11 // pred_region
          %s214 = ssub.s32 16, 16
          %215 = vsyncadd [#allocation4], %s214
          %s217 = sshll.u32 %s0, 4
          %s218 = int_to_ptr.vmem [resolvable:$true] %s217
          %220 = dma.vmem_to_smem %s218, 16, [#allocation2], [#allocation4]
        $region16: #{tpu_custom_call.1} parent=11 // pred_fallthru
          _
        // Predicated region
        $region17: #{tpu_custom_call.1} parent=11 // pred_check
          %p221 = pneg %p59
        $region18: #{tpu_custom_call.1} parent=11 // pred_check_branch
          %223 = sbr.rel (%p221) target = $region20
        $region19: #{tpu_custom_call.1} parent=11 // pred_region
          _
        $region20: #{tpu_custom_call.1} parent=11 // pred_fallthru
          _
        // Predicated region
        $region21: #{tpu_custom_call.1} parent=11 // pred_check
          %p224 = pneg %p80
        $region22: #{tpu_custom_call.1} parent=11 // pred_check_branch
          %226 = sbr.rel (%p224) target = $region24
        $region23: #{tpu_custom_call.1} parent=11 // pred_region
          _
        $region24: #{tpu_custom_call.1} parent=11 // pred_fallthru
          _
        // Predicated region
        $region25: #{tpu_custom_call.1} parent=11 // pred_check
          %p227 = pneg %p101
        $region26: #{tpu_custom_call.1} parent=11 // pred_check_branch
          %229 = sbr.rel (%p227) target = $region28
        $region27: #{tpu_custom_call.1} parent=11 // pred_region
          _
        $region28: #{tpu_custom_call.1} parent=11 // pred_fallthru
          _
        // Predicated region
        $region29: #{tpu_custom_call.1} parent=11 // pred_check
          %p230 = pneg %p122
        $region30: #{tpu_custom_call.1} parent=11 // pred_check_branch
          %232 = sbr.rel (%p230) target = $region32
        $region31: #{tpu_custom_call.1} parent=11 // pred_region
          _
        $region32: #{tpu_custom_call.1} parent=11 // pred_fallthru
          _
        // Predicated region
        $region33: #{tpu_custom_call.1} parent=11 // pred_check
          %p233 = pneg %p143
        $region34: #{tpu_custom_call.1} parent=11 // pred_check_branch
          %235 = sbr.rel (%p233) target = $region36
        $region35: #{tpu_custom_call.1} parent=11 // pred_region
          _
        $region36: #{tpu_custom_call.1} parent=11 // pred_fallthru
          _
      $region12: #{tpu_custom_call.1} parent=5 // pred_fallthru
        _
      %p236 = scmp.lt.s32.totalorder %s17, 2
      // Predicated region
      $region37: #{tpu_custom_call.1} parent=5 // pred_check
        %p237 = pneg %p236
      $region38: #{tpu_custom_call.1} parent=5 // pred_check_branch
        %239 = sbr.rel (%p237) target = $region40
      $region39: #{tpu_custom_call.1} parent=5 // pred_region
        // Predicated region
        $region41: #{tpu_custom_call.1} parent=39 // pred_check
          %p240 = pneg %p163
        $region42: #{tpu_custom_call.1} parent=39 // pred_check_branch
          %242 = sbr.rel (%p240) target = $region44
        $region43: #{tpu_custom_call.1} parent=39 // pred_region
          %p243 = scmp.lt.s32.totalorder %s17, 1
          %s244 = scalar_select %p243, %s17, 1
          %s245 = smul.addr %s244, 4
          %s246 = smul.addr %s245, 8
          %s247 = scalar_lea.vmem %s6, %s246
        $region44: #{tpu_custom_call.1} parent=39 // pred_fallthru
          _
      $region40: #{tpu_custom_call.1} parent=5 // pred_fallthru
        _
      %p248 = scmp.le.s32.totalorder 1, %s17
      %p249 = scmp.lt.s32.totalorder %s17, 3
      %p250 = pnand %p248, %p249
      %p251 = pneg %p250
      // Predicated region
      $region45: #{tpu_custom_call.1} parent=5 // pred_check
        _
      $region46: #{tpu_custom_call.1} parent=5 // pred_check_branch
        %253 = sbr.rel (%p250) target = $region48
      $region47: #{tpu_custom_call.1} parent=5 // pred_region
        %s254 = ssub.s32 %s17, 1
        // Predicated region
        $region49: #{tpu_custom_call.1} parent=47 // pred_check
          %p255 = pneg %p38
        $region50: #{tpu_custom_call.1} parent=47 // pred_check_branch
          %257 = sbr.rel (%p255) target = $region52
        $region51: #{tpu_custom_call.1} parent=47 // pred_region
          %258 = dma.done [#allocation4], 16
        $region52: #{tpu_custom_call.1} parent=47 // pred_fallthru
          _
        %259 = sfence
        %p260 = pneg %p38
        %p261 = pneg %p35
        %p262 = pneg %p59
        %p263 = pneg %p56
        %p264 = pneg %p80
        %p265 = pneg %p77
        %p266 = pneg %p101
        %p267 = pneg %p98
        %p268 = pneg %p122
        %p269 = pneg %p119
        %p270 = pneg %p143
        %p271 = pneg %p140
        %p272 = scmp.lt.s32.totalorder %s22, 1
        %s273 = scalar_select %p272, %s22, 1
        %s274 = smul.addr %s273, 4
        %s275 = smul.addr %s274, 8
        %s276 = scalar_lea.vmem %s6, %s275
        %p277 = pneg %p169
        %p278 = pneg %p166
        %p279 = pneg %p195
        %p280 = pneg %p192
        %s281 = sand.u32 %s182, 1
        %s282 = scalar_lea.sflag [#allocation3], %s281
        %s283 = sand.u32 %s182, 1
        %s284 = smul.addr %s283, 32
        %s285 = scalar_lea.vmem [#allocation5], %s284
        %p286 = scmp.lt.s32.totalorder %s22, 1
        %s287 = scalar_select %p286, %s22, 1
        %s288 = smul.addr %s287, 4
        %s289 = smul.addr %s288, 8
        %s290 = scalar_lea.vmem %s6, %s289
        %s291 = sld [smem:[#allocation2]]
        %s292 = sld [smem:[#allocation2 + $0x1]]
        %s293 = sld [smem:[#allocation2 + $0x2]]
        %s294 = sld [smem:[#allocation2 + $0x3]]
        %s295 = sld [smem:[#allocation2 + $0x4]]
        %s296 = sld [smem:[#allocation2 + $0x5]]
        %s297 = sld [smem:[#allocation2 + $0x6]]
        %v298 = vld [vmem:[%s290] sm:$0xff]
        %v299 = vld [vmem:[%s290 + $0x8] sm:$0xff]
        %v300 = vld [vmem:[%s290 + $0x10] sm:$0xff]
        %v301 = vld [vmem:[%s290 + $0x18] sm:$0xff]
        %v302 = vld [vmem:[%s1] sm:$0xf]
        %v303 = vstv %s291
        %vm304 = vcmask 130048
        %v306 = vsel %vm304, %v302, 0
        %308 = vmatprep.subr.mxu0 %v299
        %309 = vmatpush1.msra.mxu0 %v298
        %310 = vmatprep.subr.mxu0 %v301
        %311 = vmatpush1.msra.mxu0 %v300
        %312 = vmatprep.subr.mxu0 0.0
        %313 = vmatpush1.msra.mxu0 0.0
        %314 = vmatprep.subr.mxu0 0.0
        %315 = vmatpush1.msra.mxu0 0.0
        %316 = vmatprep.subr.mxu0 0.0
        %317 = vmatpush1.msra.mxu0 0.0
        %318 = vmatprep.subr.mxu0 0.0
        %319 = vmatpush1.msra.mxu0 0.0
        %320 = vmatprep.subr.mxu0 0.0
        %321 = vmatpush1.msra.mxu0 0.0
        %322 = vmatprep.subr.mxu0 0.0
        %323 = vmatpush1.msra.mxu0 0.0
        %324 = vmatprep.subr.mxu0 0.0
        %325 = vmatpush1.msra.mxu0 0.0
        %326 = vmatprep.subr.mxu0 0.0
        %327 = vmatpush1.msra.mxu0 0.0
        %328 = vmatprep.subr.mxu0 0.0
        %329 = vmatpush1.msra.mxu0 0.0
        %330 = vmatprep.subr.mxu0 0.0
        %331 = vmatpush1.msra.mxu0 0.0
        %332 = vmatprep.subr.mxu0 0.0
        %333 = vmatpush1.msra.mxu0 0.0
        %334 = vmatprep.subr.mxu0 0.0
        %335 = vmatpush1.msra.mxu0 0.0
        %336 = vmatprep.subr.mxu0 0.0
        %337 = vmatpush1.msra.mxu0 0.0
        %338 = vmatprep.subr.mxu0 0.0
        %339 = vmatpush1.msra.mxu0 0.0
        %340 = vmatprep.subr.mxu0 0.0
        %341 = vmatpush1.msra.mxu0 0.0
        %342 = vmatprep.subr.mxu0 0.0
        %343 = vmatpush1.msra.mxu0 0.0
        %344 = vmatprep.subr.mxu0 0.0
        %345 = vmatpush1.msra.mxu0 0.0
        %346 = vmatprep.subr.mxu0 0.0
        %347 = vmatpush1.msra.mxu0 0.0
        %348 = vmatprep.subr.mxu0 0.0
        %349 = vmatpush1.msra.mxu0 0.0
        %350 = vmatprep.subr.mxu0 0.0
        %351 = vmatpush1.msra.mxu0 0.0
        %352 = vmatprep.subr.mxu0 0.0
        %353 = vmatpush1.msra.mxu0 0.0
        %354 = vmatprep.subr.mxu0 0.0
        %355 = vmatpush1.msra.mxu0 0.0
        %356 = vmatprep.subr.mxu0 0.0
        %357 = vmatpush1.msra.mxu0 0.0
        %358 = vmatprep.subr.mxu0 0.0
        %359 = vmatpush1.msra.mxu0 0.0
        %360 = vmatprep.subr.mxu0 0.0
        %361 = vmatpush1.msra.mxu0 0.0
        %362 = vmatprep.subr.mxu0 0.0
        %363 = vmatpush1.msra.mxu0 0.0
        %364 = vmatprep.subr.mxu0 0.0
        %365 = vmatpush1.msra.mxu0 0.0
        %366 = vmatprep.subr.mxu0 0.0
        %367 = vmatpush1.msra.mxu0 0.0
        %368 = vmatprep.subr.mxu0 0.0
        %369 = vmatpush1.msra.mxu0 0.0
        %370 = vmatprep.subr.mxu0 0.0
        %371 = vmatpush1.msra.mxu0 0.0
        %372 = vmatprep.mubr.f32.mxu0 0.0
        %373 = vmatmul.mubr.f32.gmra.mrb[0].mxu0 %v306
        %v374 = vpop.f32.mrb[0].mxu0
        %v375 = vadd.f32 %v303, %v374
        %v376 = vpop.f32.mrb[0].mxu0
        %v377 = vadd.f32 %v303, %v376
        %378 = vdwg.mxu0
        %v379 = vmax.f32 %v375, 0.0
        %v380 = vmax.f32 %v377, 0.0
        %v381 = vstv %s292
        %v382 = vadd.f32 %v379, %v381
        %v383 = vadd.f32 %v380, %v381
        %386 = vrot.lane.b32.xlu0 %v382, 17
        %v387 = vpop.permute.xlu0 %386
        %388 = vrot.lane.b32.xlu0 %v383, 17
        %v389 = vpop.permute.xlu0 %388
        %vm390 = vcmask 138240
        %v391 = vsel %vm390, %v387, %v389
        %v395 = vsel %vm390, 0.0, %v387
        %v396 = vsel %vm390, %v389, 0.0
        %v397 = vld [vmem:[%s4] sm:$0x7]
        %v399 = vlaneseq
        %v400 = vshrl.u32 %v399, 7
        %v401 = vsub.s32 0, %v400
        %v402 = vrot.slane %v397, %v401
        %v403 = vlaneseq
        %v404 = vshrl.u32 %v403, 7
        %v405 = vsub.s32 1, %v404
        %v406 = vrot.slane %v397, %v405
        %v407 = vlaneseq
        %v408 = vshrl.u32 %v407, 7
        %v409 = vsub.s32 2, %v408
        %v410 = vrot.slane %v397, %v409
        %v414 = vmul.f32 %v395, %v402
        %v415 = vmul.f32 %v391, %v406
        %v416 = vmul.f32 %v396, %v410
        %v417 = vld [vmem:[%s5] sm:$0x7]
        %v419 = vlaneseq
        %v420 = vshrl.u32 %v419, 7
        %v421 = vsub.s32 0, %v420
        %v422 = vrot.slane %v417, %v421
        %v423 = vlaneseq
        %v424 = vshrl.u32 %v423, 7
        %v425 = vsub.s32 1, %v424
        %v426 = vrot.slane %v417, %v425
        %v427 = vlaneseq
        %v428 = vshrl.u32 %v427, 7
        %v429 = vsub.s32 2, %v428
        %v430 = vrot.slane %v417, %v429
        %v434 = vmul.f32 %v395, %v422
        %v435 = vmul.f32 %v391, %v426
        %v436 = vmul.f32 %v396, %v430
        %v437 = vld [vmem:[%s2] sm:$0xf]
        %s438 = scalar_lea.vmem %s2, 4
        %v439 = vld [vmem:[%s438] sm:$0xf]
        %442 = vrot.lane.b32.xlu0 %v395, 127
        %v443 = vpop.permute.xlu0 %442
        %444 = vrot.lane.b32.xlu0 %v391, 127
        %v445 = vpop.permute.xlu0 %444
        %446 = vrot.lane.b32.xlu0 %v396, 127
        %v447 = vpop.permute.xlu0 %446
        %vm448 = vcmask 1039360
        %v449 = vsel %vm448, %v443, %v445
        %v450 = vsel %vm448, %v445, %v447
        %vm451 = vcmask 31744
        %v453 = vsel %vm451, %v439, 0
        %vm455 = vcmask 1043456
        %v456 = vsel %vm455, %v449, 0
        %v458 = vsel %vm455, %v450, 0
        %460 = vmatprep.subr.mxu0 %v458
        %461 = vmatpush1.msra.mxu0 %v456
        %462 = vmatprep.subr.mxu0 0.0
        %463 = vmatpush1.msra.mxu0 0.0
        %464 = vmatprep.subr.mxu0 0.0
        %465 = vmatpush1.msra.mxu0 0.0
        %466 = vmatprep.subr.mxu0 0.0
        %467 = vmatpush1.msra.mxu0 0.0
        %468 = vmatprep.subr.mxu0 0.0
        %469 = vmatpush1.msra.mxu0 0.0
        %470 = vmatprep.subr.mxu0 0.0
        %471 = vmatpush1.msra.mxu0 0.0
        %472 = vmatprep.subr.mxu0 0.0
        %473 = vmatpush1.msra.mxu0 0.0
        %474 = vmatprep.subr.mxu0 0.0
        %475 = vmatpush1.msra.mxu0 0.0
        %476 = vmatprep.subr.mxu0 0.0
        %477 = vmatpush1.msra.mxu0 0.0
        %478 = vmatprep.subr.mxu0 0.0
        %479 = vmatpush1.msra.mxu0 0.0
        %480 = vmatprep.subr.mxu0 0.0
        %481 = vmatpush1.msra.mxu0 0.0
        %482 = vmatprep.subr.mxu0 0.0
        %483 = vmatpush1.msra.mxu0 0.0
        %484 = vmatprep.subr.mxu0 0.0
        %485 = vmatpush1.msra.mxu0 0.0
        %486 = vmatprep.subr.mxu0 0.0
        %487 = vmatpush1.msra.mxu0 0.0
        %488 = vmatprep.subr.mxu0 0.0
        %489 = vmatpush1.msra.mxu0 0.0
        %490 = vmatprep.subr.mxu0 0.0
        %491 = vmatpush1.msra.mxu0 0.0
        %492 = vmatprep.subr.mxu0 0.0
        %493 = vmatpush1.msra.mxu0 0.0
        %494 = vmatprep.subr.mxu0 0.0
        %495 = vmatpush1.msra.mxu0 0.0
        %496 = vmatprep.subr.mxu0 0.0
        %497 = vmatpush1.msra.mxu0 0.0
        %498 = vmatprep.subr.mxu0 0.0
        %499 = vmatpush1.msra.mxu0 0.0
        %500 = vmatprep.subr.mxu0 0.0
        %501 = vmatpush1.msra.mxu0 0.0
        %502 = vmatprep.subr.mxu0 0.0
        %503 = vmatpush1.msra.mxu0 0.0
        %504 = vmatprep.subr.mxu0 0.0
        %505 = vmatpush1.msra.mxu0 0.0
        %506 = vmatprep.subr.mxu0 0.0
        %507 = vmatpush1.msra.mxu0 0.0
        %508 = vmatprep.subr.mxu0 0.0
        %509 = vmatpush1.msra.mxu0 0.0
        %510 = vmatprep.subr.mxu0 0.0
        %511 = vmatpush1.msra.mxu0 0.0
        %512 = vmatprep.subr.mxu0 0.0
        %513 = vmatpush1.msra.mxu0 0.0
        %514 = vmatprep.subr.mxu0 0.0
        %515 = vmatpush1.msra.mxu0 0.0
        %516 = vmatprep.subr.mxu0 0.0
        %517 = vmatpush1.msra.mxu0 0.0
        %518 = vmatprep.subr.mxu0 0.0
        %519 = vmatpush1.msra.mxu0 0.0
        %520 = vmatprep.subr.mxu0 0.0
        %521 = vmatpush1.msra.mxu0 0.0
        %522 = vmatprep.subr.mxu0 0.0
        %523 = vmatpush1.msra.mxu0 0.0
        %524 = vmatprep.mubr.f32.mxu0 0.0
        %525 = vmatmul.mubr.f32.gmra.mrb[0].mxu0 %v453
        %v526 = vpop.f32.mrb[0].mxu0
        %v527 = vadd.f32 0.0, %v526
        %v528 = vpop.f32.mrb[0].mxu0
        %v529 = vadd.f32 0.0, %v528
        %530 = vdwg.mxu0
        %v532 = vsel %vm451, %v437, 0
        %v535 = vsel %vm455, %v434, 0
        %v538 = vsel %vm455, %v435, 0
        %540 = vmatprep.subr.mxu0 %v538
        %541 = vmatpush1.msra.mxu0 %v535
        %542 = vmatprep.subr.mxu0 0.0
        %543 = vmatpush1.msra.mxu0 0.0
        %544 = vmatprep.subr.mxu0 0.0
        %545 = vmatpush1.msra.mxu0 0.0
        %546 = vmatprep.subr.mxu0 0.0
        %547 = vmatpush1.msra.mxu0 0.0
        %548 = vmatprep.subr.mxu0 0.0
        %549 = vmatpush1.msra.mxu0 0.0
        %550 = vmatprep.subr.mxu0 0.0
        %551 = vmatpush1.msra.mxu0 0.0
        %552 = vmatprep.subr.mxu0 0.0
        %553 = vmatpush1.msra.mxu0 0.0
        %554 = vmatprep.subr.mxu0 0.0
        %555 = vmatpush1.msra.mxu0 0.0
        %556 = vmatprep.subr.mxu0 0.0
        %557 = vmatpush1.msra.mxu0 0.0
        %558 = vmatprep.subr.mxu0 0.0
        %559 = vmatpush1.msra.mxu0 0.0
        %560 = vmatprep.subr.mxu0 0.0
        %561 = vmatpush1.msra.mxu0 0.0
        %562 = vmatprep.subr.mxu0 0.0
        %563 = vmatpush1.msra.mxu0 0.0
        %564 = vmatprep.subr.mxu0 0.0
        %565 = vmatpush1.msra.mxu0 0.0
        %566 = vmatprep.subr.mxu0 0.0
        %567 = vmatpush1.msra.mxu0 0.0
        %568 = vmatprep.subr.mxu0 0.0
        %569 = vmatpush1.msra.mxu0 0.0
        %570 = vmatprep.subr.mxu0 0.0
        %571 = vmatpush1.msra.mxu0 0.0
        %572 = vmatprep.subr.mxu0 0.0
        %573 = vmatpush1.msra.mxu0 0.0
        %574 = vmatprep.subr.mxu0 0.0
        %575 = vmatpush1.msra.mxu0 0.0
        %576 = vmatprep.subr.mxu0 0.0
        %577 = vmatpush1.msra.mxu0 0.0
        %578 = vmatprep.subr.mxu0 0.0
        %579 = vmatpush1.msra.mxu0 0.0
        %580 = vmatprep.subr.mxu0 0.0
        %581 = vmatpush1.msra.mxu0 0.0
        %582 = vmatprep.subr.mxu0 0.0
        %583 = vmatpush1.msra.mxu0 0.0
        %584 = vmatprep.subr.mxu0 0.0
        %585 = vmatpush1.msra.mxu0 0.0
        %586 = vmatprep.subr.mxu0 0.0
        %587 = vmatpush1.msra.mxu0 0.0
        %588 = vmatprep.subr.mxu0 0.0
        %589 = vmatpush1.msra.mxu0 0.0
        %590 = vmatprep.subr.mxu0 0.0
        %591 = vmatpush1.msra.mxu0 0.0
        %592 = vmatprep.subr.mxu0 0.0
        %593 = vmatpush1.msra.mxu0 0.0
        %594 = vmatprep.subr.mxu0 0.0
        %595 = vmatpush1.msra.mxu0 0.0
        %596 = vmatprep.subr.mxu0 0.0
        %597 = vmatpush1.msra.mxu0 0.0
        %598 = vmatprep.subr.mxu0 0.0
        %599 = vmatpush1.msra.mxu0 0.0
        %600 = vmatprep.subr.mxu0 0.0
        %601 = vmatpush1.msra.mxu0 0.0
        %602 = vmatprep.subr.mxu0 0.0
        %603 = vmatpush1.msra.mxu0 0.0
        %604 = vmatprep.mubr.f32.mxu0 0.0
        %605 = vmatmul.mubr.f32.gmra.mrb[0].mxu0 %v532
        %v606 = vpop.f32.mrb[0].mxu0
        %v607 = vadd.f32 %v527, %v606
        %v608 = vpop.f32.mrb[0].mxu0
        %v609 = vadd.f32 %v529, %v608
        %610 = vdwg.mxu0
        %s611 = scalar_lea.vmem %s2, 8
        %v612 = vld [vmem:[%s611] sm:$0xf]
        %616 = vrot.lane.b32.xlu0 %v414, 126
        %v617 = vpop.permute.xlu0 %616
        %618 = vrot.lane.b32.xlu0 %v415, 126
        %v619 = vpop.permute.xlu0 %618
        %620 = vrot.lane.b32.xlu0 %v416, 126
        %v621 = vpop.permute.xlu0 %620
        %vm622 = vcmask 1031168
        %v623 = vsel %vm622, %v617, %v619
        %v624 = vsel %vm622, %v619, %v621
        %v626 = vsel %vm451, %v612, 0
        %v628 = vsel %vm455, %v623, 0
        %v630 = vsel %vm455, %v624, 0
        %632 = vmatprep.subr.mxu0 %v630
        %633 = vmatpush1.msra.mxu0 %v628
        %634 = vmatprep.subr.mxu0 0.0
        %635 = vmatpush1.msra.mxu0 0.0
        %636 = vmatprep.subr.mxu0 0.0
        %637 = vmatpush1.msra.mxu0 0.0
        %638 = vmatprep.subr.mxu0 0.0
        %639 = vmatpush1.msra.mxu0 0.0
        %640 = vmatprep.subr.mxu0 0.0
        %641 = vmatpush1.msra.mxu0 0.0
        %642 = vmatprep.subr.mxu0 0.0
        %643 = vmatpush1.msra.mxu0 0.0
        %644 = vmatprep.subr.mxu0 0.0
        %645 = vmatpush1.msra.mxu0 0.0
        %646 = vmatprep.subr.mxu0 0.0
        %647 = vmatpush1.msra.mxu0 0.0
        %648 = vmatprep.subr.mxu0 0.0
        %649 = vmatpush1.msra.mxu0 0.0
        %650 = vmatprep.subr.mxu0 0.0
        %651 = vmatpush1.msra.mxu0 0.0
        %652 = vmatprep.subr.mxu0 0.0
        %653 = vmatpush1.msra.mxu0 0.0
        %654 = vmatprep.subr.mxu0 0.0
        %655 = vmatpush1.msra.mxu0 0.0
        %656 = vmatprep.subr.mxu0 0.0
        %657 = vmatpush1.msra.mxu0 0.0
        %658 = vmatprep.subr.mxu0 0.0
        %659 = vmatpush1.msra.mxu0 0.0
        %660 = vmatprep.subr.mxu0 0.0
        %661 = vmatpush1.msra.mxu0 0.0
        %662 = vmatprep.subr.mxu0 0.0
        %663 = vmatpush1.msra.mxu0 0.0
        %664 = vmatprep.subr.mxu0 0.0
        %665 = vmatpush1.msra.mxu0 0.0
        %666 = vmatprep.subr.mxu0 0.0
        %667 = vmatpush1.msra.mxu0 0.0
        %668 = vmatprep.subr.mxu0 0.0
        %669 = vmatpush1.msra.mxu0 0.0
        %670 = vmatprep.subr.mxu0 0.0
        %671 = vmatpush1.msra.mxu0 0.0
        %672 = vmatprep.subr.mxu0 0.0
        %673 = vmatpush1.msra.mxu0 0.0
        %674 = vmatprep.subr.mxu0 0.0
        %675 = vmatpush1.msra.mxu0 0.0
        %676 = vmatprep.subr.mxu0 0.0
        %677 = vmatpush1.msra.mxu0 0.0
        %678 = vmatprep.subr.mxu0 0.0
        %679 = vmatpush1.msra.mxu0 0.0
        %680 = vmatprep.subr.mxu0 0.0
        %681 = vmatpush1.msra.mxu0 0.0
        %682 = vmatprep.subr.mxu0 0.0
        %683 = vmatpush1.msra.mxu0 0.0
        %684 = vmatprep.subr.mxu0 0.0
        %685 = vmatpush1.msra.mxu0 0.0
        %686 = vmatprep.subr.mxu0 0.0
        %687 = vmatpush1.msra.mxu0 0.0
        %688 = vmatprep.subr.mxu0 0.0
        %689 = vmatpush1.msra.mxu0 0.0
        %690 = vmatprep.subr.mxu0 0.0
        %691 = vmatpush1.msra.mxu0 0.0
        %692 = vmatprep.subr.mxu0 0.0
        %693 = vmatpush1.msra.mxu0 0.0
        %694 = vmatprep.subr.mxu0 0.0
        %695 = vmatpush1.msra.mxu0 0.0
        %696 = vmatprep.mubr.f32.mxu0 0.0
        %697 = vmatmul.mubr.f32.gmra.mrb[0].mxu0 %v626
        %v698 = vpop.f32.mrb[0].mxu0
        %v699 = vadd.f32 0.0, %v698
        %v700 = vpop.f32.mrb[0].mxu0
        %v701 = vadd.f32 0.0, %v700
        %702 = vdwg.mxu0
        %v703 = vadd.f32 %v607, %v699
        %v704 = vadd.f32 %v609, %v701
        %s705 = scalar_lea.vmem %s2, 12
        %v706 = vld [vmem:[%s705] sm:$0xf]
        %708 = vrot.lane.b32.xlu0 %v434, 112
        %v709 = vpop.permute.xlu0 %708
        %710 = vrot.lane.b32.xlu0 %v435, 112
        %v711 = vpop.permute.xlu0 %710
        %712 = vrot.lane.b32.xlu0 %v436, 112
        %v713 = vpop.permute.xlu0 %712
        %vm714 = vcmask 916480
        %v715 = vsel %vm714, %v709, %v711
        %v716 = vsel %vm714, %v711, %v713
        %v718 = vsel %vm451, %v706, 0
        %v720 = vsel %vm455, %v715, 0
        %v722 = vsel %vm455, %v716, 0
        %724 = vmatprep.subr.mxu0 %v722
        %725 = vmatpush1.msra.mxu0 %v720
        %726 = vmatprep.subr.mxu0 0.0
        %727 = vmatpush1.msra.mxu0 0.0
        %728 = vmatprep.subr.mxu0 0.0
        %729 = vmatpush1.msra.mxu0 0.0
        %730 = vmatprep.subr.mxu0 0.0
        %731 = vmatpush1.msra.mxu0 0.0
        %732 = vmatprep.subr.mxu0 0.0
        %733 = vmatpush1.msra.mxu0 0.0
        %734 = vmatprep.subr.mxu0 0.0
        %735 = vmatpush1.msra.mxu0 0.0
        %736 = vmatprep.subr.mxu0 0.0
        %737 = vmatpush1.msra.mxu0 0.0
        %738 = vmatprep.subr.mxu0 0.0
        %739 = vmatpush1.msra.mxu0 0.0
        %740 = vmatprep.subr.mxu0 0.0
        %741 = vmatpush1.msra.mxu0 0.0
        %742 = vmatprep.subr.mxu0 0.0
        %743 = vmatpush1.msra.mxu0 0.0
        %744 = vmatprep.subr.mxu0 0.0
        %745 = vmatpush1.msra.mxu0 0.0
        %746 = vmatprep.subr.mxu0 0.0
        %747 = vmatpush1.msra.mxu0 0.0
        %748 = vmatprep.subr.mxu0 0.0
        %749 = vmatpush1.msra.mxu0 0.0
        %750 = vmatprep.subr.mxu0 0.0
        %751 = vmatpush1.msra.mxu0 0.0
        %752 = vmatprep.subr.mxu0 0.0
        %753 = vmatpush1.msra.mxu0 0.0
        %754 = vmatprep.subr.mxu0 0.0
        %755 = vmatpush1.msra.mxu0 0.0
        %756 = vmatprep.subr.mxu0 0.0
        %757 = vmatpush1.msra.mxu0 0.0
        %758 = vmatprep.subr.mxu0 0.0
        %759 = vmatpush1.msra.mxu0 0.0
        %760 = vmatprep.subr.mxu0 0.0
        %761 = vmatpush1.msra.mxu0 0.0
        %762 = vmatprep.subr.mxu0 0.0
        %763 = vmatpush1.msra.mxu0 0.0
        %764 = vmatprep.subr.mxu0 0.0
        %765 = vmatpush1.msra.mxu0 0.0
        %766 = vmatprep.subr.mxu0 0.0
        %767 = vmatpush1.msra.mxu0 0.0
        %768 = vmatprep.subr.mxu0 0.0
        %769 = vmatpush1.msra.mxu0 0.0
        %770 = vmatprep.subr.mxu0 0.0
        %771 = vmatpush1.msra.mxu0 0.0
        %772 = vmatprep.subr.mxu0 0.0
        %773 = vmatpush1.msra.mxu0 0.0
        %774 = vmatprep.subr.mxu0 0.0
        %775 = vmatpush1.msra.mxu0 0.0
        %776 = vmatprep.subr.mxu0 0.0
        %777 = vmatpush1.msra.mxu0 0.0
        %778 = vmatprep.subr.mxu0 0.0
        %779 = vmatpush1.msra.mxu0 0.0
        %780 = vmatprep.subr.mxu0 0.0
        %781 = vmatpush1.msra.mxu0 0.0
        %782 = vmatprep.subr.mxu0 0.0
        %783 = vmatpush1.msra.mxu0 0.0
        %784 = vmatprep.subr.mxu0 0.0
        %785 = vmatpush1.msra.mxu0 0.0
        %786 = vmatprep.subr.mxu0 0.0
        %787 = vmatpush1.msra.mxu0 0.0
        %788 = vmatprep.mubr.f32.mxu0 0.0
        %789 = vmatmul.mubr.f32.gmra.mrb[0].mxu0 %v718
        %v790 = vpop.f32.mrb[0].mxu0
        %v791 = vadd.f32 0.0, %v790
        %v792 = vpop.f32.mrb[0].mxu0
        %v793 = vadd.f32 0.0, %v792
        %794 = vdwg.mxu0
        %v795 = vadd.f32 %v703, %v791
        %v796 = vadd.f32 %v704, %v793
        %s797 = scalar_lea.vmem %s2, 16
        %v798 = vld [vmem:[%s797] sm:$0xf]
        %799 = vrot.lane.b32.xlu0 %v395, 111
        %v800 = vpop.permute.xlu0 %799
        %801 = vrot.lane.b32.xlu0 %v391, 111
        %v802 = vpop.permute.xlu0 %801
        %803 = vrot.lane.b32.xlu0 %v396, 111
        %v804 = vpop.permute.xlu0 %803
        %vm805 = vcmask 908288
        %v806 = vsel %vm805, %v800, %v802
        %v807 = vsel %vm805, %v802, %v804
        %v809 = vsel %vm451, %v798, 0
        %v811 = vsel %vm455, %v806, 0
        %v813 = vsel %vm455, %v807, 0
        %815 = vmatprep.subr.mxu0 %v813
        %816 = vmatpush1.msra.mxu0 %v811
        %817 = vmatprep.subr.mxu0 0.0
        %818 = vmatpush1.msra.mxu0 0.0
        %819 = vmatprep.subr.mxu0 0.0
        %820 = vmatpush1.msra.mxu0 0.0
        %821 = vmatprep.subr.mxu0 0.0
        %822 = vmatpush1.msra.mxu0 0.0
        %823 = vmatprep.subr.mxu0 0.0
        %824 = vmatpush1.msra.mxu0 0.0
        %825 = vmatprep.subr.mxu0 0.0
        %826 = vmatpush1.msra.mxu0 0.0
        %827 = vmatprep.subr.mxu0 0.0
        %828 = vmatpush1.msra.mxu0 0.0
        %829 = vmatprep.subr.mxu0 0.0
        %830 = vmatpush1.msra.mxu0 0.0
        %831 = vmatprep.subr.mxu0 0.0
        %832 = vmatpush1.msra.mxu0 0.0
        %833 = vmatprep.subr.mxu0 0.0
        %834 = vmatpush1.msra.mxu0 0.0
        %835 = vmatprep.subr.mxu0 0.0
        %836 = vmatpush1.msra.mxu0 0.0
        %837 = vmatprep.subr.mxu0 0.0
        %838 = vmatpush1.msra.mxu0 0.0
        %839 = vmatprep.subr.mxu0 0.0
        %840 = vmatpush1.msra.mxu0 0.0
        %841 = vmatprep.subr.mxu0 0.0
        %842 = vmatpush1.msra.mxu0 0.0
        %843 = vmatprep.subr.mxu0 0.0
        %844 = vmatpush1.msra.mxu0 0.0
        %845 = vmatprep.subr.mxu0 0.0
        %846 = vmatpush1.msra.mxu0 0.0
        %847 = vmatprep.subr.mxu0 0.0
        %848 = vmatpush1.msra.mxu0 0.0
        %849 = vmatprep.subr.mxu0 0.0
        %850 = vmatpush1.msra.mxu0 0.0
        %851 = vmatprep.subr.mxu0 0.0
        %852 = vmatpush1.msra.mxu0 0.0
        %853 = vmatprep.subr.mxu0 0.0
        %854 = vmatpush1.msra.mxu0 0.0
        %855 = vmatprep.subr.mxu0 0.0
        %856 = vmatpush1.msra.mxu0 0.0
        %857 = vmatprep.subr.mxu0 0.0
        %858 = vmatpush1.msra.mxu0 0.0
        %859 = vmatprep.subr.mxu0 0.0
        %860 = vmatpush1.msra.mxu0 0.0
        %861 = vmatprep.subr.mxu0 0.0
        %862 = vmatpush1.msra.mxu0 0.0
        %863 = vmatprep.subr.mxu0 0.0
        %864 = vmatpush1.msra.mxu0 0.0
        %865 = vmatprep.subr.mxu0 0.0
        %866 = vmatpush1.msra.mxu0 0.0
        %867 = vmatprep.subr.mxu0 0.0
        %868 = vmatpush1.msra.mxu0 0.0
        %869 = vmatprep.subr.mxu0 0.0
        %870 = vmatpush1.msra.mxu0 0.0
        %871 = vmatprep.subr.mxu0 0.0
        %872 = vmatpush1.msra.mxu0 0.0
        %873 = vmatprep.subr.mxu0 0.0
        %874 = vmatpush1.msra.mxu0 0.0
        %875 = vmatprep.subr.mxu0 0.0
        %876 = vmatpush1.msra.mxu0 0.0
        %877 = vmatprep.subr.mxu0 0.0
        %878 = vmatpush1.msra.mxu0 0.0
        %879 = vmatprep.mubr.f32.mxu0 0.0
        %880 = vmatmul.mubr.f32.gmra.mrb[0].mxu0 %v809
        %v881 = vpop.f32.mrb[0].mxu0
        %v882 = vadd.f32 0.0, %v881
        %v883 = vpop.f32.mrb[0].mxu0
        %v884 = vadd.f32 0.0, %v883
        %885 = vdwg.mxu0
        %v886 = vadd.f32 %v795, %v882
        %v887 = vadd.f32 %v796, %v884
        %s888 = scalar_lea.vmem %s2, 20
        %v889 = vld [vmem:[%s888] sm:$0xf]
        %890 = vrot.lane.b32.xlu0 %v414, 110
        %v891 = vpop.permute.xlu0 %890
        %892 = vrot.lane.b32.xlu0 %v415, 110
        %v893 = vpop.permute.xlu0 %892
        %894 = vrot.lane.b32.xlu0 %v416, 110
        %v895 = vpop.permute.xlu0 %894
        %vm896 = vcmask 900096
        %v897 = vsel %vm896, %v891, %v893
        %v898 = vsel %vm896, %v893, %v895
        %v900 = vsel %vm451, %v889, 0
        %v902 = vsel %vm455, %v897, 0
        %v904 = vsel %vm455, %v898, 0
        %906 = vmatprep.subr.mxu0 %v904
        %907 = vmatpush1.msra.mxu0 %v902
        %908 = vmatprep.subr.mxu0 0.0
        %909 = vmatpush1.msra.mxu0 0.0
        %910 = vmatprep.subr.mxu0 0.0
        %911 = vmatpush1.msra.mxu0 0.0
        %912 = vmatprep.subr.mxu0 0.0
        %913 = vmatpush1.msra.mxu0 0.0
        %914 = vmatprep.subr.mxu0 0.0
        %915 = vmatpush1.msra.mxu0 0.0
        %916 = vmatprep.subr.mxu0 0.0
        %917 = vmatpush1.msra.mxu0 0.0
        %918 = vmatprep.subr.mxu0 0.0
        %919 = vmatpush1.msra.mxu0 0.0
        %920 = vmatprep.subr.mxu0 0.0
        %921 = vmatpush1.msra.mxu0 0.0
        %922 = vmatprep.subr.mxu0 0.0
        %923 = vmatpush1.msra.mxu0 0.0
        %924 = vmatprep.subr.mxu0 0.0
        %925 = vmatpush1.msra.mxu0 0.0
        %926 = vmatprep.subr.mxu0 0.0
        %927 = vmatpush1.msra.mxu0 0.0
        %928 = vmatprep.subr.mxu0 0.0
        %929 = vmatpush1.msra.mxu0 0.0
        %930 = vmatprep.subr.mxu0 0.0
        %931 = vmatpush1.msra.mxu0 0.0
        %932 = vmatprep.subr.mxu0 0.0
        %933 = vmatpush1.msra.mxu0 0.0
        %934 = vmatprep.subr.mxu0 0.0
        %935 = vmatpush1.msra.mxu0 0.0
        %936 = vmatprep.subr.mxu0 0.0
        %937 = vmatpush1.msra.mxu0 0.0
        %938 = vmatprep.subr.mxu0 0.0
        %939 = vmatpush1.msra.mxu0 0.0
        %940 = vmatprep.subr.mxu0 0.0
        %941 = vmatpush1.msra.mxu0 0.0
        %942 = vmatprep.subr.mxu0 0.0
        %943 = vmatpush1.msra.mxu0 0.0
        %944 = vmatprep.subr.mxu0 0.0
        %945 = vmatpush1.msra.mxu0 0.0
        %946 = vmatprep.subr.mxu0 0.0
        %947 = vmatpush1.msra.mxu0 0.0
        %948 = vmatprep.subr.mxu0 0.0
        %949 = vmatpush1.msra.mxu0 0.0
        %950 = vmatprep.subr.mxu0 0.0
        %951 = vmatpush1.msra.mxu0 0.0
        %952 = vmatprep.subr.mxu0 0.0
        %953 = vmatpush1.msra.mxu0 0.0
        %954 = vmatprep.subr.mxu0 0.0
        %955 = vmatpush1.msra.mxu0 0.0
        %956 = vmatprep.subr.mxu0 0.0
        %957 = vmatpush1.msra.mxu0 0.0
        %958 = vmatprep.subr.mxu0 0.0
        %959 = vmatpush1.msra.mxu0 0.0
        %960 = vmatprep.subr.mxu0 0.0
        %961 = vmatpush1.msra.mxu0 0.0
        %962 = vmatprep.subr.mxu0 0.0
        %963 = vmatpush1.msra.mxu0 0.0
        %964 = vmatprep.subr.mxu0 0.0
        %965 = vmatpush1.msra.mxu0 0.0
        %966 = vmatprep.subr.mxu0 0.0
        %967 = vmatpush1.msra.mxu0 0.0
        %968 = vmatprep.subr.mxu0 0.0
        %969 = vmatpush1.msra.mxu0 0.0
        %970 = vmatprep.mubr.f32.mxu0 0.0
        %971 = vmatmul.mubr.f32.gmra.mrb[0].mxu0 %v900
        %v972 = vpop.f32.mrb[0].mxu0
        %v973 = vadd.f32 0.0, %v972
        %v974 = vpop.f32.mrb[0].mxu0
        %v975 = vadd.f32 0.0, %v974
        %976 = vdwg.mxu0
        %v977 = vadd.f32 %v886, %v973
        %v978 = vadd.f32 %v887, %v975
        %s979 = scalar_lea.vmem %s2, 24
        %v980 = vld [vmem:[%s979] sm:$0xf]
        %981 = vrot.lane.b32.xlu0 %v434, 96
        %v982 = vpop.permute.xlu0 %981
        %983 = vrot.lane.b32.xlu0 %v435, 96
        %v984 = vpop.permute.xlu0 %983
        %985 = vrot.lane.b32.xlu0 %v436, 96
        %v986 = vpop.permute.xlu0 %985
        %vm987 = vcmask 785408
        %v988 = vsel %vm987, %v982, %v984
        %v989 = vsel %vm987, %v984, %v986
        %v991 = vsel %vm451, %v980, 0
        %v993 = vsel %vm455, %v988, 0
        %v995 = vsel %vm455, %v989, 0
        %997 = vmatprep.subr.mxu0 %v995
        %998 = vmatpush1.msra.mxu0 %v993
        %999 = vmatprep.subr.mxu0 0.0
        %1000 = vmatpush1.msra.mxu0 0.0
        %1001 = vmatprep.subr.mxu0 0.0
        %1002 = vmatpush1.msra.mxu0 0.0
        %1003 = vmatprep.subr.mxu0 0.0
        %1004 = vmatpush1.msra.mxu0 0.0
        %1005 = vmatprep.subr.mxu0 0.0
        %1006 = vmatpush1.msra.mxu0 0.0
        %1007 = vmatprep.subr.mxu0 0.0
        %1008 = vmatpush1.msra.mxu0 0.0
        %1009 = vmatprep.subr.mxu0 0.0
        %1010 = vmatpush1.msra.mxu0 0.0
        %1011 = vmatprep.subr.mxu0 0.0
        %1012 = vmatpush1.msra.mxu0 0.0
        %1013 = vmatprep.subr.mxu0 0.0
        %1014 = vmatpush1.msra.mxu0 0.0
        %1015 = vmatprep.subr.mxu0 0.0
        %1016 = vmatpush1.msra.mxu0 0.0
        %1017 = vmatprep.subr.mxu0 0.0
        %1018 = vmatpush1.msra.mxu0 0.0
        %1019 = vmatprep.subr.mxu0 0.0
        %1020 = vmatpush1.msra.mxu0 0.0
        %1021 = vmatprep.subr.mxu0 0.0
        %1022 = vmatpush1.msra.mxu0 0.0
        %1023 = vmatprep.subr.mxu0 0.0
        %1024 = vmatpush1.msra.mxu0 0.0
        %1025 = vmatprep.subr.mxu0 0.0
        %1026 = vmatpush1.msra.mxu0 0.0
        %1027 = vmatprep.subr.mxu0 0.0
        %1028 = vmatpush1.msra.mxu0 0.0
        %1029 = vmatprep.subr.mxu0 0.0
        %1030 = vmatpush1.msra.mxu0 0.0
        %1031 = vmatprep.subr.mxu0 0.0
        %1032 = vmatpush1.msra.mxu0 0.0
        %1033 = vmatprep.subr.mxu0 0.0
        %1034 = vmatpush1.msra.mxu0 0.0
        %1035 = vmatprep.subr.mxu0 0.0
        %1036 = vmatpush1.msra.mxu0 0.0
        %1037 = vmatprep.subr.mxu0 0.0
        %1038 = vmatpush1.msra.mxu0 0.0
        %1039 = vmatprep.subr.mxu0 0.0
        %1040 = vmatpush1.msra.mxu0 0.0
        %1041 = vmatprep.subr.mxu0 0.0
        %1042 = vmatpush1.msra.mxu0 0.0
        %1043 = vmatprep.subr.mxu0 0.0
        %1044 = vmatpush1.msra.mxu0 0.0
        %1045 = vmatprep.subr.mxu0 0.0
        %1046 = vmatpush1.msra.mxu0 0.0
        %1047 = vmatprep.subr.mxu0 0.0
        %1048 = vmatpush1.msra.mxu0 0.0
        %1049 = vmatprep.subr.mxu0 0.0
        %1050 = vmatpush1.msra.mxu0 0.0
        %1051 = vmatprep.subr.mxu0 0.0
        %1052 = vmatpush1.msra.mxu0 0.0
        %1053 = vmatprep.subr.mxu0 0.0
        %1054 = vmatpush1.msra.mxu0 0.0
        %1055 = vmatprep.subr.mxu0 0.0
        %1056 = vmatpush1.msra.mxu0 0.0
        %1057 = vmatprep.subr.mxu0 0.0
        %1058 = vmatpush1.msra.mxu0 0.0
        %1059 = vmatprep.subr.mxu0 0.0
        %1060 = vmatpush1.msra.mxu0 0.0
        %1061 = vmatprep.mubr.f32.mxu0 0.0
        %1062 = vmatmul.mubr.f32.gmra.mrb[0].mxu0 %v991
        %v1063 = vpop.f32.mrb[0].mxu0
        %v1064 = vadd.f32 0.0, %v1063
        %v1065 = vpop.f32.mrb[0].mxu0
        %v1066 = vadd.f32 0.0, %v1065
        %1067 = vdwg.mxu0
        %v1068 = vadd.f32 %v977, %v1064
        %v1069 = vadd.f32 %v978, %v1066
        %s1070 = scalar_lea.vmem %s2, 28
        %v1071 = vld [vmem:[%s1070] sm:$0xf]
        %1072 = vrot.lane.b32.xlu0 %v395, 95
        %v1073 = vpop.permute.xlu0 %1072
        %1074 = vrot.lane.b32.xlu0 %v391, 95
        %v1075 = vpop.permute.xlu0 %1074
        %1076 = vrot.lane.b32.xlu0 %v396, 95
        %v1077 = vpop.permute.xlu0 %1076
        %vm1078 = vcmask 777216
        %v1079 = vsel %vm1078, %v1073, %v1075
        %v1080 = vsel %vm1078, %v1075, %v1077
        %v1082 = vsel %vm451, %v1071, 0
        %v1084 = vsel %vm455, %v1079, 0
        %v1086 = vsel %vm455, %v1080, 0
        %1088 = vmatprep.subr.mxu0 %v1086
        %1089 = vmatpush1.msra.mxu0 %v1084
        %1090 = vmatprep.subr.mxu0 0.0
        %1091 = vmatpush1.msra.mxu0 0.0
        %1092 = vmatprep.subr.mxu0 0.0
        %1093 = vmatpush1.msra.mxu0 0.0
        %1094 = vmatprep.subr.mxu0 0.0
        %1095 = vmatpush1.msra.mxu0 0.0
        %1096 = vmatprep.subr.mxu0 0.0
        %1097 = vmatpush1.msra.mxu0 0.0
        %1098 = vmatprep.subr.mxu0 0.0
        %1099 = vmatpush1.msra.mxu0 0.0
        %1100 = vmatprep.subr.mxu0 0.0
        %1101 = vmatpush1.msra.mxu0 0.0
        %1102 = vmatprep.subr.mxu0 0.0
        %1103 = vmatpush1.msra.mxu0 0.0
        %1104 = vmatprep.subr.mxu0 0.0
        %1105 = vmatpush1.msra.mxu0 0.0
        %1106 = vmatprep.subr.mxu0 0.0
        %1107 = vmatpush1.msra.mxu0 0.0
        %1108 = vmatprep.subr.mxu0 0.0
        %1109 = vmatpush1.msra.mxu0 0.0
        %1110 = vmatprep.subr.mxu0 0.0
        %1111 = vmatpush1.msra.mxu0 0.0
        %1112 = vmatprep.subr.mxu0 0.0
        %1113 = vmatpush1.msra.mxu0 0.0
        %1114 = vmatprep.subr.mxu0 0.0
        %1115 = vmatpush1.msra.mxu0 0.0
        %1116 = vmatprep.subr.mxu0 0.0
        %1117 = vmatpush1.msra.mxu0 0.0
        %1118 = vmatprep.subr.mxu0 0.0
        %1119 = vmatpush1.msra.mxu0 0.0
        %1120 = vmatprep.subr.mxu0 0.0
        %1121 = vmatpush1.msra.mxu0 0.0
        %1122 = vmatprep.subr.mxu0 0.0
        %1123 = vmatpush1.msra.mxu0 0.0
        %1124 = vmatprep.subr.mxu0 0.0
        %1125 = vmatpush1.msra.mxu0 0.0
        %1126 = vmatprep.subr.mxu0 0.0
        %1127 = vmatpush1.msra.mxu0 0.0
        %1128 = vmatprep.subr.mxu0 0.0
        %1129 = vmatpush1.msra.mxu0 0.0
        %1130 = vmatprep.subr.mxu0 0.0
        %1131 = vmatpush1.msra.mxu0 0.0
        %1132 = vmatprep.subr.mxu0 0.0
        %1133 = vmatpush1.msra.mxu0 0.0
        %1134 = vmatprep.subr.mxu0 0.0
        %1135 = vmatpush1.msra.mxu0 0.0
        %1136 = vmatprep.subr.mxu0 0.0
        %1137 = vmatpush1.msra.mxu0 0.0
        %1138 = vmatprep.subr.mxu0 0.0
        %1139 = vmatpush1.msra.mxu0 0.0
        %1140 = vmatprep.subr.mxu0 0.0
        %1141 = vmatpush1.msra.mxu0 0.0
        %1142 = vmatprep.subr.mxu0 0.0
        %1143 = vmatpush1.msra.mxu0 0.0
        %1144 = vmatprep.subr.mxu0 0.0
        %1145 = vmatpush1.msra.mxu0 0.0
        %1146 = vmatprep.subr.mxu0 0.0
        %1147 = vmatpush1.msra.mxu0 0.0
        %1148 = vmatprep.subr.mxu0 0.0
        %1149 = vmatpush1.msra.mxu0 0.0
        %1150 = vmatprep.subr.mxu0 0.0
        %1151 = vmatpush1.msra.mxu0 0.0
        %1152 = vmatprep.mubr.f32.mxu0 0.0
        %1153 = vmatmul.mubr.f32.gmra.mrb[0].mxu0 %v1082
        %v1154 = vpop.f32.mrb[0].mxu0
        %v1155 = vadd.f32 0.0, %v1154
        %v1156 = vpop.f32.mrb[0].mxu0
        %v1157 = vadd.f32 0.0, %v1156
        %1158 = vdwg.mxu0
        %v1159 = vadd.f32 %v1068, %v1155
        %v1160 = vadd.f32 %v1069, %v1157
        %s1161 = scalar_lea.vmem %s2, 32
        %v1162 = vld [vmem:[%s1161] sm:$0xf]
        %1163 = vrot.lane.b32.xlu0 %v414, 94
        %v1164 = vpop.permute.xlu0 %1163
        %1165 = vrot.lane.b32.xlu0 %v415, 94
        %v1166 = vpop.permute.xlu0 %1165
        %1167 = vrot.lane.b32.xlu0 %v416, 94
        %v1168 = vpop.permute.xlu0 %1167
        %vm1169 = vcmask 769024
        %v1170 = vsel %vm1169, %v1164, %v1166
        %v1171 = vsel %vm1169, %v1166, %v1168
        %v1173 = vsel %vm451, %v1162, 0
        %v1175 = vsel %vm455, %v1170, 0
        %v1177 = vsel %vm455, %v1171, 0
        %1179 = vmatprep.subr.mxu0 %v1177
        %1180 = vmatpush1.msra.mxu0 %v1175
        %1181 = vmatprep.subr.mxu0 0.0
        %1182 = vmatpush1.msra.mxu0 0.0
        %1183 = vmatprep.subr.mxu0 0.0
        %1184 = vmatpush1.msra.mxu0 0.0
        %1185 = vmatprep.subr.mxu0 0.0
        %1186 = vmatpush1.msra.mxu0 0.0
        %1187 = vmatprep.subr.mxu0 0.0
        %1188 = vmatpush1.msra.mxu0 0.0
        %1189 = vmatprep.subr.mxu0 0.0
        %1190 = vmatpush1.msra.mxu0 0.0
        %1191 = vmatprep.subr.mxu0 0.0
        %1192 = vmatpush1.msra.mxu0 0.0
        %1193 = vmatprep.subr.mxu0 0.0
        %1194 = vmatpush1.msra.mxu0 0.0
        %1195 = vmatprep.subr.mxu0 0.0
        %1196 = vmatpush1.msra.mxu0 0.0
        %1197 = vmatprep.subr.mxu0 0.0
        %1198 = vmatpush1.msra.mxu0 0.0
        %1199 = vmatprep.subr.mxu0 0.0
        %1200 = vmatpush1.msra.mxu0 0.0
        %1201 = vmatprep.subr.mxu0 0.0
        %1202 = vmatpush1.msra.mxu0 0.0
        %1203 = vmatprep.subr.mxu0 0.0
        %1204 = vmatpush1.msra.mxu0 0.0
        %1205 = vmatprep.subr.mxu0 0.0
        %1206 = vmatpush1.msra.mxu0 0.0
        %1207 = vmatprep.subr.mxu0 0.0
        %1208 = vmatpush1.msra.mxu0 0.0
        %1209 = vmatprep.subr.mxu0 0.0
        %1210 = vmatpush1.msra.mxu0 0.0
        %1211 = vmatprep.subr.mxu0 0.0
        %1212 = vmatpush1.msra.mxu0 0.0
        %1213 = vmatprep.subr.mxu0 0.0
        %1214 = vmatpush1.msra.mxu0 0.0
        %1215 = vmatprep.subr.mxu0 0.0
        %1216 = vmatpush1.msra.mxu0 0.0
        %1217 = vmatprep.subr.mxu0 0.0
        %1218 = vmatpush1.msra.mxu0 0.0
        %1219 = vmatprep.subr.mxu0 0.0
        %1220 = vmatpush1.msra.mxu0 0.0
        %1221 = vmatprep.subr.mxu0 0.0
        %1222 = vmatpush1.msra.mxu0 0.0
        %1223 = vmatprep.subr.mxu0 0.0
        %1224 = vmatpush1.msra.mxu0 0.0
        %1225 = vmatprep.subr.mxu0 0.0
        %1226 = vmatpush1.msra.mxu0 0.0
        %1227 = vmatprep.subr.mxu0 0.0
        %1228 = vmatpush1.msra.mxu0 0.0
        %1229 = vmatprep.subr.mxu0 0.0
        %1230 = vmatpush1.msra.mxu0 0.0
        %1231 = vmatprep.subr.mxu0 0.0
        %1232 = vmatpush1.msra.mxu0 0.0
        %1233 = vmatprep.subr.mxu0 0.0
        %1234 = vmatpush1.msra.mxu0 0.0
        %1235 = vmatprep.subr.mxu0 0.0
        %1236 = vmatpush1.msra.mxu0 0.0
        %1237 = vmatprep.subr.mxu0 0.0
        %1238 = vmatpush1.msra.mxu0 0.0
        %1239 = vmatprep.subr.mxu0 0.0
        %1240 = vmatpush1.msra.mxu0 0.0
        %1241 = vmatprep.subr.mxu0 0.0
        %1242 = vmatpush1.msra.mxu0 0.0
        %1243 = vmatprep.mubr.f32.mxu0 0.0
        %1244 = vmatmul.mubr.f32.gmra.mrb[0].mxu0 %v1173
        %v1245 = vpop.f32.mrb[0].mxu0
        %v1246 = vadd.f32 0.0, %v1245
        %v1247 = vpop.f32.mrb[0].mxu0
        %v1248 = vadd.f32 0.0, %v1247
        %1249 = vdwg.mxu0
        %v1250 = vadd.f32 %v1159, %v1246
        %v1251 = vadd.f32 %v1160, %v1248
        %v1252 = vstv %s293
        %v1253 = vadd.f32 %v1250, %v1252
        %v1254 = vadd.f32 %v1251, %v1252
        %v1255 = vmax.f32 %v1253, 0.0
        %v1256 = vmax.f32 %v1254, 0.0
        %v1257 = vstv %s294
        %v1258 = vadd.f32 %v1255, %v1257
        %v1259 = vadd.f32 %v1256, %v1257
        %v1260 = vld [vmem:[%s3] sm:$0xff]
        %v1261 = vld [vmem:[%s3 + $0x8] sm:$0xff]
        %v1262 = vstv %s295
        %v1264 = vsel %vm451, %v1260, 0
        %v1267 = vsel %vm451, %v1261, 0
        %v1270 = vsel %vm455, %v1258, 0
        %v1273 = vsel %vm455, %v1259, 0
        %1275 = vmatprep.subr.mxu0 %v1273
        %1276 = vmatpush1.msra.mxu0 %v1270
        %1277 = vmatprep.subr.mxu0 0.0
        %1278 = vmatpush1.msra.mxu0 0.0
        %1279 = vmatprep.subr.mxu0 0.0
        %1280 = vmatpush1.msra.mxu0 0.0
        %1281 = vmatprep.subr.mxu0 0.0
        %1282 = vmatpush1.msra.mxu0 0.0
        %1283 = vmatprep.subr.mxu0 0.0
        %1284 = vmatpush1.msra.mxu0 0.0
        %1285 = vmatprep.subr.mxu0 0.0
        %1286 = vmatpush1.msra.mxu0 0.0
        %1287 = vmatprep.subr.mxu0 0.0
        %1288 = vmatpush1.msra.mxu0 0.0
        %1289 = vmatprep.subr.mxu0 0.0
        %1290 = vmatpush1.msra.mxu0 0.0
        %1291 = vmatprep.subr.mxu0 0.0
        %1292 = vmatpush1.msra.mxu0 0.0
        %1293 = vmatprep.subr.mxu0 0.0
        %1294 = vmatpush1.msra.mxu0 0.0
        %1295 = vmatprep.subr.mxu0 0.0
        %1296 = vmatpush1.msra.mxu0 0.0
        %1297 = vmatprep.subr.mxu0 0.0
        %1298 = vmatpush1.msra.mxu0 0.0
        %1299 = vmatprep.subr.mxu0 0.0
        %1300 = vmatpush1.msra.mxu0 0.0
        %1301 = vmatprep.subr.mxu0 0.0
        %1302 = vmatpush1.msra.mxu0 0.0
        %1303 = vmatprep.subr.mxu0 0.0
        %1304 = vmatpush1.msra.mxu0 0.0
        %1305 = vmatprep.subr.mxu0 0.0
        %1306 = vmatpush1.msra.mxu0 0.0
        %1307 = vmatprep.subr.mxu0 0.0
        %1308 = vmatpush1.msra.mxu0 0.0
        %1309 = vmatprep.subr.mxu0 0.0
        %1310 = vmatpush1.msra.mxu0 0.0
        %1311 = vmatprep.subr.mxu0 0.0
        %1312 = vmatpush1.msra.mxu0 0.0
        %1313 = vmatprep.subr.mxu0 0.0
        %1314 = vmatpush1.msra.mxu0 0.0
        %1315 = vmatprep.subr.mxu0 0.0
        %1316 = vmatpush1.msra.mxu0 0.0
        %1317 = vmatprep.subr.mxu0 0.0
        %1318 = vmatpush1.msra.mxu0 0.0
        %1319 = vmatprep.subr.mxu0 0.0
        %1320 = vmatpush1.msra.mxu0 0.0
        %1321 = vmatprep.subr.mxu0 0.0
        %1322 = vmatpush1.msra.mxu0 0.0
        %1323 = vmatprep.subr.mxu0 0.0
        %1324 = vmatpush1.msra.mxu0 0.0
        %1325 = vmatprep.subr.mxu0 0.0
        %1326 = vmatpush1.msra.mxu0 0.0
        %1327 = vmatprep.subr.mxu0 0.0
        %1328 = vmatpush1.msra.mxu0 0.0
        %1329 = vmatprep.subr.mxu0 0.0
        %1330 = vmatpush1.msra.mxu0 0.0
        %1331 = vmatprep.subr.mxu0 0.0
        %1332 = vmatpush1.msra.mxu0 0.0
        %1333 = vmatprep.subr.mxu0 0.0
        %1334 = vmatpush1.msra.mxu0 0.0
        %1335 = vmatprep.subr.mxu0 0.0
        %1336 = vmatpush1.msra.mxu0 0.0
        %1337 = vmatprep.subr.mxu0 0.0
        %1338 = vmatpush1.msra.mxu0 0.0
        %1339 = vmatprep.mubr.f32.mxu0 0.0
        %1340 = vmatmul.mubr.f32.gmra.mrb[0].mxu0 %v1264
        %v1341 = vpop.f32.mrb[0].mxu0
        %v1342 = vadd.f32 %v1262, %v1341
        %v1343 = vpop.f32.mrb[0].mxu0
        %v1344 = vadd.f32 %v1262, %v1343
        %1345 = vmatprep.mubr.f32.mxu0 0.0
        %1346 = vmatmul.mubr.f32.gmra.mrb[0].mxu0 %v1267
        %v1347 = vpop.f32.mrb[0].mxu0
        %v1348 = vadd.f32 %v1262, %v1347
        %v1349 = vpop.f32.mrb[0].mxu0
        %v1350 = vadd.f32 %v1262, %v1349
        %1351 = vdwg.mxu0
        %v1352 = vstv %s296
        %v1353 = vmul.f32 %v1342, %v1352
        %v1354 = vmul.f32 %v1344, %v1352
        %v1355 = vmul.f32 %v1348, %v1352
        %v1356 = vmul.f32 %v1350, %v1352
        %v1357 = vstv %s297
        %v1358 = vadd.f32 %v1353, %v1357
        %v1359 = vadd.f32 %v1354, %v1357
        %v1360 = vadd.f32 %v1355, %v1357
        %v1361 = vadd.f32 %v1356, %v1357
        %v1362 = vadd.f32 %v1358, %v298
        %v1363 = vadd.f32 %v1359, %v299
        %v1364 = vadd.f32 %v1360, %v300
        %v1365 = vadd.f32 %v1361, %v301
        %v1366 = vmax.f32 %v1362, 0.0
        %v1367 = vmax.f32 %v1363, 0.0
        %v1368 = vmax.f32 %v1364, 0.0
        %v1369 = vmax.f32 %v1365, 0.0
        %1370 = vst [vmem:[%s285] sm:$0xff] %v1366
        %1371 = vst [vmem:[%s285 + $0x8] sm:$0xff] %v1367
        %1372 = vst [vmem:[%s285 + $0x10] sm:$0xff] %v1368
        %1373 = vst [vmem:[%s285 + $0x18] sm:$0xff] %v1369
        %s1374 = sand.u32 %s182, 1
        %s1375 = scalar_lea.sflag [#allocation3], %s1374
        %s1376 = sand.u32 %s182, 1
        %s1377 = smul.addr %s1376, 32
        %s1378 = scalar_lea.vmem [#allocation5], %s1377
        // Predicated region
        $region53: #{tpu_custom_call.1} parent=47 // pred_check
          %p1379 = pneg %p192
        $region54: #{tpu_custom_call.1} parent=47 // pred_check_branch
          %1381 = sbr.rel (%p1379) target = $region56
        $region55: #{tpu_custom_call.1} parent=47 // pred_region
          %s1383 = ssub.s32 512, 512
          %1384 = vsyncadd %s1375, %s1383
          %s1385 = smul.addr %s22, 4
          %s1386 = smul.addr %s1385, 128
          %s1387 = scalar_lea.hbm %s7, %s1386
          %s1388 = sshll.u32 %s1378, 4
          %s1389 = int_to_ptr.vmem [resolvable:$true] %s1388
          %1394 = dma.vmem_to_hbm [thread:$0]  %s1389, 512, %s1387, %s1375, 256, 256, 16
        $region56: #{tpu_custom_call.1} parent=47 // pred_fallthru
          _
      $region48: #{tpu_custom_call.1} parent=5 // pred_fallthru
        _
      %p1395 = scmp.le.s32.totalorder 2, %s17
      // Predicated region
      $region57: #{tpu_custom_call.1} parent=5 // pred_check
        %p1396 = pneg %p1395
      $region58: #{tpu_custom_call.1} parent=5 // pred_check_branch
        %1398 = sbr.rel (%p1396) target = $region60
      $region59: #{tpu_custom_call.1} parent=5 // pred_region
        %s1399 = ssub.s32 %s17, 2
        // Predicated region
        $region61: #{tpu_custom_call.1} parent=59 // pred_check
          %p1400 = pneg %p198
        $region62: #{tpu_custom_call.1} parent=59 // pred_check_branch
          %1402 = sbr.rel (%p1400) target = $region64
        $region63: #{tpu_custom_call.1} parent=59 // pred_region
          %s1403 = sand.u32 %s183, 1
          %s1404 = scalar_lea.sflag [#allocation3], %s1403
          %s1405 = sand.u32 %s183, 1
          %s1406 = smul.addr %s1405, 32
          %s1407 = scalar_lea.vmem [#allocation5], %s1406
          %1408 = dma.done %s1404, 512
        $region64: #{tpu_custom_call.1} parent=59 // pred_fallthru
          _
      $region60: #{tpu_custom_call.1} parent=5 // pred_fallthru
        _
    $region6: #{tpu_custom_call.1} parent=1 // loop_footer
      %s21 = sadd.s32 1, %s17
    $region7: #{tpu_custom_call.1} parent=1 // loop_footer_branch
      %16 = sbr.rel target = $region3
    $region8: #{tpu_custom_call.1} parent=1 // loop_exit
      _
    %1409 = vsyncpa [#allocation3], 1
    %s1410 = scalar_lea.sflag [#allocation3], 1
    %1411 = vsyncpa %s1410, 1
    %1412 = vsyncpa [#allocation4], 1
    %s1413 = scalar_lea.sflag [#allocation4], 1
    %1414 = vsyncpa %s1413, 1

</llo_original>
